<compile_context>
chip_gen: v7x
topology: tpu7x:2x2x1
jax: 0.10.0
libtpu: 0.0.40
codegen_flags: <defaults>
</compile_context>

<pallas_src>
import functools
import math

import jax
import jax.numpy as jnp
from jax import lax
from jax.experimental import pallas as pl
from jax.experimental.pallas import tpu as pltpu

_EPS = 1e-5


def _bn_train_fused(y, gb, inv_n):
    """Training-mode BatchNorm1d (biased batch variance, eps=1e-5).

    Single-pass statistics (sum and sum-of-squares), then fused scale/shift.
    y: (B, O) f32, gb: (2, O) f32.
    """
    s1 = jnp.sum(y, axis=0, keepdims=True)
    s2 = jnp.sum(y * y, axis=0, keepdims=True)
    mean = s1 * inv_n
    var = s2 * inv_n - mean * mean          # E[y^2] - E[y]^2 (post-Linear is ~zero-mean)
    scale = gb[0:1, :] * lax.rsqrt(var + _EPS)
    shift = gb[1:2, :] - mean * scale
    return y * scale + shift


def fused_resnet_kernel(block_num, in_dim, hidden, out_dim, inv_n, *refs):
    """Whole Linear_resnet forward in a single kernel.

    refs layout (all VMEM):
      x_ref,
      packed0_ref,                      # initial Linear+BN:  (in_dim+2,  out_dim) bf16
      [packed1_ref, packed2_ref] * block_num,
                                        # per block:          (out_dim+2, hidden) bf16
                                        #                     (hidden+2,  out_dim) bf16
      o_ref
    Each packed tensor = [ W^T (in, out) ; gamma (1, out) ; beta (1, out) ] in bf16.
    Linear biases are intentionally omitted (exact cancellation under training BN).
    """
    x_ref = refs[0]
    o_ref = refs[-1]
    p = refs[1:-1]

    def linear_bn(a_f32, packed_ref, in_d, relu):
        w = packed_ref[:in_d, :]                                   # bf16 (in_d, out)
        gb = packed_ref[in_d:, :].astype(jnp.float32)              # (2, out)
        y = jnp.dot(a_f32.astype(jnp.bfloat16), w,
                    preferred_element_type=jnp.float32)
        y = _bn_train_fused(y, gb, inv_n)
        if relu:
            y = jnp.maximum(y, 0.0)
        return y

    # Initial layer: Linear -> BN -> ReLU
    h = linear_bn(x_ref[...], p[0], in_dim, relu=True)

    # Residual blocks: h = h + BN(Linear(ReLU(BN(Linear(h)))))
    for i in range(block_num):
        t = linear_bn(h, p[1 + 2 * i], out_dim, relu=True)
        u = linear_bn(t, p[2 + 2 * i], hidden, relu=False)
        h = h + u

    o_ref[...] = h


def linear_resnet_forward(params, x, hidden=512):
    """Single fused pallas_call over the whole network."""
    block_num = len(params["blocks"])
    in_dim = x.shape[1]
    out_dim = params["init_packed"].shape[1]

    inputs = [x, params["init_packed"]]
    for blk in params["blocks"]:
        inputs += [blk["p1"], blk["p2"]]

    n = x.shape[0]
    vmem = pl.BlockSpec(memory_space=pltpu.MemorySpace.VMEM)

    # Size the VMEM limit from the actual footprint (weights + x + out) with generous
    # headroom for intermediates; clamp under v7x's 64 MiB physical VMEM.
    footprint = sum(a.size * a.dtype.itemsize for a in inputs) + n * out_dim * 4
    vmem_limit = min(64 * 1024 * 1024, max(8 * 1024 * 1024, 4 * footprint))

    kernel = functools.partial(
        fused_resnet_kernel, block_num, in_dim, hidden, out_dim, 1.0 / float(n)
    )
    return pl.pallas_call(
        kernel,
        out_shape=jax.ShapeDtypeStruct((n, out_dim), jnp.float32),
        in_specs=[vmem] * len(inputs),
        out_specs=vmem,
        compiler_params=pltpu.CompilerParams(
            vmem_limit_bytes=int(vmem_limit),
        ),
    )(*inputs)


# ------------------------- parameter construction (deterministic) -------------------------

def _linear_params(key, in_dim, out_dim):
    """PyTorch nn.Linear-style init; returns f32 (out, in) weight and (out,) bias."""
    kw, kb = jax.random.split(key)
    bound = 1.0 / math.sqrt(in_dim)
    w = jax.random.uniform(kw, (out_dim, in_dim), jnp.float32, -bound, bound)
    b = jax.random.uniform(kb, (out_dim,), jnp.float32, -bound, bound)
    return w, b


def _bn_params(key, dim):
    kg, kb = jax.random.split(key)
    gamma = 1.0 + 0.05 * jax.random.normal(kg, (dim,), jnp.float32)
    beta = 0.05 * jax.random.normal(kb, (dim,), jnp.float32)
    return gamma, beta


def _pack(w, gamma, beta):
    """[ W^T ; gamma ; beta ] -> (in+2, out), stored bf16 (kernel payload)."""
    return jnp.concatenate(
        [w.T, gamma[None, :], beta[None, :]], axis=0
    ).astype(jnp.bfloat16)


def make_linear_resnet_params(key, input_size, output_size, block_num, hidden=512):
    keys = jax.random.split(key, 2 + 4 * block_num)
    params = {}

    w0, b0 = _linear_params(keys[0], input_size, output_size)
    g0, be0 = _bn_params(keys[1], output_size)
    params["init_packed"] = _pack(w0, g0, be0)
    params["init_ref"] = (w0, b0, g0, be0)          # f32 copies for the reference only

    blocks = []
    for i in range(block_num):
        k0, k1, k2, k3 = keys[2 + 4 * i: 6 + 4 * i]
        w1, b1 = _linear_params(k0, output_size, hidden)
        g1, be1 = _bn_params(k1, hidden)
        w2, b2 = _linear_params(k2, hidden, output_size)
        g2, be2 = _bn_params(k3, output_size)
        blocks.append({
            "p1": _pack(w1, g1, be1),
            "p2": _pack(w2, g2, be2),
            "ref1": (w1, b1, g1, be1),
            "ref2": (w2, b2, g2, be2),
        })
    params["blocks"] = blocks
    return params


# ------------------------------- pure-JAX references -------------------------------

def _ref_bn(y, gamma, beta):
    mean = jnp.mean(y, axis=0, keepdims=True)
    var = jnp.mean((y - mean) ** 2, axis=0, keepdims=True)
    return gamma * (y - mean) / jnp.sqrt(var + _EPS) + beta


def _ref_forward_fp32(params, x):
    """Full-precision reference WITH the Linear bias (original module semantics).
    The kernel drops the bias, which must cancel under training-mode BN."""
    w0, b0, g0, be0 = params["init_ref"]
    h = jnp.maximum(_ref_bn(x @ w0.T + b0, g0, be0), 0.0)
    for blk in params["blocks"]:
        w1, b1, g1, be1 = blk["ref1"]
        w2, b2, g2, be2 = blk["ref2"]
        t = jnp.maximum(_ref_bn(h @ w1.T + b1, g1, be1), 0.0)
        h = h + _ref_bn(t @ w2.T + b2, g2, be2)
    return h


def _ref_forward_matched(params, x, inv_n):
    """Precision-matched reference mirroring the kernel math exactly
    (bf16 weights / bf16 dot LHS, f32 accumulation, one-pass BN, no bias)."""
    def linear_bn(a, packed, in_d, relu):
        w = packed[:in_d, :]
        gb = packed[in_d:, :].astype(jnp.float32)
        y = jnp.dot(a.astype(jnp.bfloat16), w, preferred_element_type=jnp.float32)
        y = _bn_train_fused(y, gb, inv_n)
        return jnp.maximum(y, 0.0) if relu else y

    in_dim = x.shape[1]
    out_dim = params["init_packed"].shape[1]
    hidden = params["blocks"][0]["p1"].shape[1] if params["blocks"] else 512

    h = linear_bn(x, params["init_packed"], in_dim, True)
    for blk in params["blocks"]:
        t = linear_bn(h, blk["p1"], out_dim, True)
        h = h + linear_bn(t, blk["p2"], hidden, False)
    return h


if __name__ == "__main__":
    batch = 8
    input_size = 32
    output_size = 128
    block_num = 2
    hidden = 512

    key = jax.random.PRNGKey(0)
    kx, kp = jax.random.split(key)
    x = jax.random.normal(kx, (batch, input_size), jnp.float32)
    params = make_linear_resnet_params(kp, input_size, output_size, block_num, hidden)

    out = linear_resnet_forward(params, x, hidden=hidden)
    out = jax.block_until_ready(out)
    assert out.shape == (batch, output_size)

    # Tight check against a reference that mirrors the kernel's bf16/one-pass math.
    ref_matched = _ref_forward_matched(params, x, 1.0 / batch)
    assert jnp.allclose(out, ref_matched, atol=1e-2, rtol=1e-2), \
        "mismatch vs precision-matched reference"

    # Loose check against the full-precision original-module semantics (with bias):
    # validates training-mode BN + bias cancellation; tolerance reflects bf16 weights.
    ref_f32 = _ref_forward_fp32(params, x)
    assert jnp.allclose(out, ref_f32, atol=5e-2, rtol=5e-2), \
        "mismatch vs fp32 reference"

    print("KERNEL_OK")
</pallas_src>

<mosaic_0001>
module attributes {stable_mosaic.version = 11 : i64} {
  func.func @fused_resnet_kernel(%arg0: memref<8x32xf32, #tpu.memory_space<vmem>>, %arg1: memref<34x128xbf16, #tpu.memory_space<vmem>>, %arg2: memref<130x512xbf16, #tpu.memory_space<vmem>>, %arg3: memref<514x128xbf16, #tpu.memory_space<vmem>>, %arg4: memref<130x512xbf16, #tpu.memory_space<vmem>>, %arg5: memref<514x128xbf16, #tpu.memory_space<vmem>>, %arg6: memref<8x128xf32, #tpu.memory_space<vmem>>) attributes {dimension_semantics = [], scalar_prefetch = 0 : i64, scratch_operands = 0 : i64, tpu.core_type = #tpu.core_type<tc>} {
    %c0 = arith.constant 0 : index
    %c0_0 = arith.constant 0 : index
    %0 = vector.load %arg0[%c0, %c0_0] : memref<8x32xf32, #tpu.memory_space<vmem>>, vector<8x32xf32>
    %c0_1 = arith.constant 0 : index
    %c0_2 = arith.constant 0 : index
    %1 = vector.load %arg1[%c0_1, %c0_2] : memref<34x128xbf16, #tpu.memory_space<vmem>>, vector<32x128xbf16>
    %c32 = arith.constant 32 : index
    %c0_3 = arith.constant 0 : index
    %2 = vector.load %arg1[%c32, %c0_3] : memref<34x128xbf16, #tpu.memory_space<vmem>>, vector<2x128xbf16>
    %3 = arith.extf %2 : vector<2x128xbf16> to vector<2x128xf32>
    %4 = arith.truncf %0 : vector<8x32xf32> to vector<8x32xbf16>
    %cst = arith.constant dense<0.000000e+00> : vector<8x128xf32>
    %5 = tpu.matmul %4, %1, %cst {dimension_numbers = #tpu.dot_dimension_numbers<[1], [0], [0], [1], [0, 0, 1, 1], [], []>} : vector<8x32xbf16>, vector<32x128xbf16>, vector<8x128xf32> -> vector<8x128xf32>
    %cst_4 = arith.constant dense<0.000000e+00> : vector<128xf32>
    %6 = vector.multi_reduction <add>, %5, %cst_4 [0] : vector<8x128xf32> to vector<128xf32>
    %7 = vector.shape_cast %6 : vector<128xf32> to vector<1x128xf32>
    %8 = arith.mulf %5, %5 : vector<8x128xf32>
    %cst_5 = arith.constant dense<0.000000e+00> : vector<128xf32>
    %9 = vector.multi_reduction <add>, %8, %cst_5 [0] : vector<8x128xf32> to vector<128xf32>
    %10 = vector.shape_cast %9 : vector<128xf32> to vector<1x128xf32>
    %cst_6 = arith.constant 1.250000e-01 : f32
    %11 = vector.broadcast %cst_6 : f32 to vector<1x128xf32>
    %12 = arith.mulf %7, %11 : vector<1x128xf32>
    %cst_7 = arith.constant 1.250000e-01 : f32
    %13 = vector.broadcast %cst_7 : f32 to vector<1x128xf32>
    %14 = arith.mulf %10, %13 : vector<1x128xf32>
    %15 = arith.mulf %12, %12 : vector<1x128xf32>
    %16 = arith.subf %14, %15 : vector<1x128xf32>
    %17 = vector.extract_strided_slice %3 {offsets = [0, 0], sizes = [1, 128], strides = [1, 1]} : vector<2x128xf32> to vector<1x128xf32>
    %cst_8 = arith.constant 9.99999974E-6 : f32
    %18 = vector.broadcast %cst_8 : f32 to vector<1x128xf32>
    %19 = arith.addf %16, %18 : vector<1x128xf32>
    %20 = math.rsqrt %19 : vector<1x128xf32>
    %21 = arith.mulf %17, %20 : vector<1x128xf32>
    %22 = vector.extract_strided_slice %3 {offsets = [1, 0], sizes = [1, 128], strides = [1, 1]} : vector<2x128xf32> to vector<1x128xf32>
    %23 = arith.mulf %12, %21 : vector<1x128xf32>
    %24 = arith.subf %22, %23 : vector<1x128xf32>
    %25 = vector.broadcast %21 : vector<1x128xf32> to vector<8x128xf32>
    %26 = arith.mulf %5, %25 : vector<8x128xf32>
    %27 = vector.broadcast %24 : vector<1x128xf32> to vector<8x128xf32>
    %28 = arith.addf %26, %27 : vector<8x128xf32>
    %cst_9 = arith.constant 0.000000e+00 : f32
    %29 = vector.broadcast %cst_9 : f32 to vector<8x128xf32>
    %30 = arith.maximumf %28, %29 : vector<8x128xf32>
    %c0_10 = arith.constant 0 : index
    %c0_11 = arith.constant 0 : index
    %31 = vector.load %arg2[%c0_10, %c0_11] : memref<130x512xbf16, #tpu.memory_space<vmem>>, vector<128x512xbf16>
    %c128 = arith.constant 128 : index
    %c0_12 = arith.constant 0 : index
    %32 = vector.load %arg2[%c128, %c0_12] : memref<130x512xbf16, #tpu.memory_space<vmem>>, vector<2x512xbf16>
    %33 = arith.extf %32 : vector<2x512xbf16> to vector<2x512xf32>
    %34 = arith.truncf %30 : vector<8x128xf32> to vector<8x128xbf16>
    %cst_13 = arith.constant dense<0.000000e+00> : vector<8x512xf32>
    %35 = tpu.matmul %34, %31, %cst_13 {dimension_numbers = #tpu.dot_dimension_numbers<[1], [0], [0], [1], [0, 0, 1, 1], [], []>} : vector<8x128xbf16>, vector<128x512xbf16>, vector<8x512xf32> -> vector<8x512xf32>
    %cst_14 = arith.constant dense<0.000000e+00> : vector<512xf32>
    %36 = vector.multi_reduction <add>, %35, %cst_14 [0] : vector<8x512xf32> to vector<512xf32>
    %37 = vector.shape_cast %36 : vector<512xf32> to vector<1x512xf32>
    %38 = arith.mulf %35, %35 : vector<8x512xf32>
    %cst_15 = arith.constant dense<0.000000e+00> : vector<512xf32>
    %39 = vector.multi_reduction <add>, %38, %cst_15 [0] : vector<8x512xf32> to vector<512xf32>
    %40 = vector.shape_cast %39 : vector<512xf32> to vector<1x512xf32>
    %cst_16 = arith.constant 1.250000e-01 : f32
    %41 = vector.broadcast %cst_16 : f32 to vector<1x512xf32>
    %42 = arith.mulf %37, %41 : vector<1x512xf32>
    %cst_17 = arith.constant 1.250000e-01 : f32
    %43 = vector.broadcast %cst_17 : f32 to vector<1x512xf32>
    %44 = arith.mulf %40, %43 : vector<1x512xf32>
    %45 = arith.mulf %42, %42 : vector<1x512xf32>
    %46 = arith.subf %44, %45 : vector<1x512xf32>
    %47 = vector.extract_strided_slice %33 {offsets = [0, 0], sizes = [1, 512], strides = [1, 1]} : vector<2x512xf32> to vector<1x512xf32>
    %cst_18 = arith.constant 9.99999974E-6 : f32
    %48 = vector.broadcast %cst_18 : f32 to vector<1x512xf32>
    %49 = arith.addf %46, %48 : vector<1x512xf32>
    %50 = math.rsqrt %49 : vector<1x512xf32>
    %51 = arith.mulf %47, %50 : vector<1x512xf32>
    %52 = vector.extract_strided_slice %33 {offsets = [1, 0], sizes = [1, 512], strides = [1, 1]} : vector<2x512xf32> to vector<1x512xf32>
    %53 = arith.mulf %42, %51 : vector<1x512xf32>
    %54 = arith.subf %52, %53 : vector<1x512xf32>
    %55 = vector.broadcast %51 : vector<1x512xf32> to vector<8x512xf32>
    %56 = arith.mulf %35, %55 : vector<8x512xf32>
    %57 = vector.broadcast %54 : vector<1x512xf32> to vector<8x512xf32>
    %58 = arith.addf %56, %57 : vector<8x512xf32>
    %cst_19 = arith.constant 0.000000e+00 : f32
    %59 = vector.broadcast %cst_19 : f32 to vector<8x512xf32>
    %60 = arith.maximumf %58, %59 : vector<8x512xf32>
    %c0_20 = arith.constant 0 : index
    %c0_21 = arith.constant 0 : index
    %61 = vector.load %arg3[%c0_20, %c0_21] : memref<514x128xbf16, #tpu.memory_space<vmem>>, vector<512x128xbf16>
    %c512 = arith.constant 512 : index
    %c0_22 = arith.constant 0 : index
    %62 = vector.load %arg3[%c512, %c0_22] : memref<514x128xbf16, #tpu.memory_space<vmem>>, vector<2x128xbf16>
    %63 = arith.extf %62 : vector<2x128xbf16> to vector<2x128xf32>
    %64 = arith.truncf %60 : vector<8x512xf32> to vector<8x512xbf16>
    %cst_23 = arith.constant dense<0.000000e+00> : vector<8x128xf32>
    %65 = tpu.matmul %64, %61, %cst_23 {dimension_numbers = #tpu.dot_dimension_numbers<[1], [0], [0], [1], [0, 0, 1, 1], [], []>} : vector<8x512xbf16>, vector<512x128xbf16>, vector<8x128xf32> -> vector<8x128xf32>
    %cst_24 = arith.constant dense<0.000000e+00> : vector<128xf32>
    %66 = vector.multi_reduction <add>, %65, %cst_24 [0] : vector<8x128xf32> to vector<128xf32>
    %67 = vector.shape_cast %66 : vector<128xf32> to vector<1x128xf32>
    %68 = arith.mulf %65, %65 : vector<8x128xf32>
    %cst_25 = arith.constant dense<0.000000e+00> : vector<128xf32>
    %69 = vector.multi_reduction <add>, %68, %cst_25 [0] : vector<8x128xf32> to vector<128xf32>
    %70 = vector.shape_cast %69 : vector<128xf32> to vector<1x128xf32>
    %cst_26 = arith.constant 1.250000e-01 : f32
    %71 = vector.broadcast %cst_26 : f32 to vector<1x128xf32>
    %72 = arith.mulf %67, %71 : vector<1x128xf32>
    %cst_27 = arith.constant 1.250000e-01 : f32
    %73 = vector.broadcast %cst_27 : f32 to vector<1x128xf32>
    %74 = arith.mulf %70, %73 : vector<1x128xf32>
    %75 = arith.mulf %72, %72 : vector<1x128xf32>
    %76 = arith.subf %74, %75 : vector<1x128xf32>
    %77 = vector.extract_strided_slice %63 {offsets = [0, 0], sizes = [1, 128], strides = [1, 1]} : vector<2x128xf32> to vector<1x128xf32>
    %cst_28 = arith.constant 9.99999974E-6 : f32
    %78 = vector.broadcast %cst_28 : f32 to vector<1x128xf32>
    %79 = arith.addf %76, %78 : vector<1x128xf32>
    %80 = math.rsqrt %79 : vector<1x128xf32>
    %81 = arith.mulf %77, %80 : vector<1x128xf32>
    %82 = vector.extract_strided_slice %63 {offsets = [1, 0], sizes = [1, 128], strides = [1, 1]} : vector<2x128xf32> to vector<1x128xf32>
    %83 = arith.mulf %72, %81 : vector<1x128xf32>
    %84 = arith.subf %82, %83 : vector<1x128xf32>
    %85 = vector.broadcast %81 : vector<1x128xf32> to vector<8x128xf32>
    %86 = arith.mulf %65, %85 : vector<8x128xf32>
    %87 = vector.broadcast %84 : vector<1x128xf32> to vector<8x128xf32>
    %88 = arith.addf %86, %87 : vector<8x128xf32>
    %89 = arith.addf %30, %88 : vector<8x128xf32>
    %c0_29 = arith.constant 0 : index
    %c0_30 = arith.constant 0 : index
    %90 = vector.load %arg4[%c0_29, %c0_30] : memref<130x512xbf16, #tpu.memory_space<vmem>>, vector<128x512xbf16>
    %c128_31 = arith.constant 128 : index
    %c0_32 = arith.constant 0 : index
    %91 = vector.load %arg4[%c128_31, %c0_32] : memref<130x512xbf16, #tpu.memory_space<vmem>>, vector<2x512xbf16>
    %92 = arith.extf %91 : vector<2x512xbf16> to vector<2x512xf32>
    %93 = arith.truncf %89 : vector<8x128xf32> to vector<8x128xbf16>
    %cst_33 = arith.constant dense<0.000000e+00> : vector<8x512xf32>
    %94 = tpu.matmul %93, %90, %cst_33 {dimension_numbers = #tpu.dot_dimension_numbers<[1], [0], [0], [1], [0, 0, 1, 1], [], []>} : vector<8x128xbf16>, vector<128x512xbf16>, vector<8x512xf32> -> vector<8x512xf32>
    %cst_34 = arith.constant dense<0.000000e+00> : vector<512xf32>
    %95 = vector.multi_reduction <add>, %94, %cst_34 [0] : vector<8x512xf32> to vector<512xf32>
    %96 = vector.shape_cast %95 : vector<512xf32> to vector<1x512xf32>
    %97 = arith.mulf %94, %94 : vector<8x512xf32>
    %cst_35 = arith.constant dense<0.000000e+00> : vector<512xf32>
    %98 = vector.multi_reduction <add>, %97, %cst_35 [0] : vector<8x512xf32> to vector<512xf32>
    %99 = vector.shape_cast %98 : vector<512xf32> to vector<1x512xf32>
    %cst_36 = arith.constant 1.250000e-01 : f32
    %100 = vector.broadcast %cst_36 : f32 to vector<1x512xf32>
    %101 = arith.mulf %96, %100 : vector<1x512xf32>
    %cst_37 = arith.constant 1.250000e-01 : f32
    %102 = vector.broadcast %cst_37 : f32 to vector<1x512xf32>
    %103 = arith.mulf %99, %102 : vector<1x512xf32>
    %104 = arith.mulf %101, %101 : vector<1x512xf32>
    %105 = arith.subf %103, %104 : vector<1x512xf32>
    %106 = vector.extract_strided_slice %92 {offsets = [0, 0], sizes = [1, 512], strides = [1, 1]} : vector<2x512xf32> to vector<1x512xf32>
    %cst_38 = arith.constant 9.99999974E-6 : f32
    %107 = vector.broadcast %cst_38 : f32 to vector<1x512xf32>
    %108 = arith.addf %105, %107 : vector<1x512xf32>
    %109 = math.rsqrt %108 : vector<1x512xf32>
    %110 = arith.mulf %106, %109 : vector<1x512xf32>
    %111 = vector.extract_strided_slice %92 {offsets = [1, 0], sizes = [1, 512], strides = [1, 1]} : vector<2x512xf32> to vector<1x512xf32>
    %112 = arith.mulf %101, %110 : vector<1x512xf32>
    %113 = arith.subf %111, %112 : vector<1x512xf32>
    %114 = vector.broadcast %110 : vector<1x512xf32> to vector<8x512xf32>
    %115 = arith.mulf %94, %114 : vector<8x512xf32>
    %116 = vector.broadcast %113 : vector<1x512xf32> to vector<8x512xf32>
    %117 = arith.addf %115, %116 : vector<8x512xf32>
    %cst_39 = arith.constant 0.000000e+00 : f32
    %118 = vector.broadcast %cst_39 : f32 to vector<8x512xf32>
    %119 = arith.maximumf %117, %118 : vector<8x512xf32>
    %c0_40 = arith.constant 0 : index
    %c0_41 = arith.constant 0 : index
    %120 = vector.load %arg5[%c0_40, %c0_41] : memref<514x128xbf16, #tpu.memory_space<vmem>>, vector<512x128xbf16>
    %c512_42 = arith.constant 512 : index
    %c0_43 = arith.constant 0 : index
    %121 = vector.load %arg5[%c512_42, %c0_43] : memref<514x128xbf16, #tpu.memory_space<vmem>>, vector<2x128xbf16>
    %122 = arith.extf %121 : vector<2x128xbf16> to vector<2x128xf32>
    %123 = arith.truncf %119 : vector<8x512xf32> to vector<8x512xbf16>
    %cst_44 = arith.constant dense<0.000000e+00> : vector<8x128xf32>
    %124 = tpu.matmul %123, %120, %cst_44 {dimension_numbers = #tpu.dot_dimension_numbers<[1], [0], [0], [1], [0, 0, 1, 1], [], []>} : vector<8x512xbf16>, vector<512x128xbf16>, vector<8x128xf32> -> vector<8x128xf32>
    %cst_45 = arith.constant dense<0.000000e+00> : vector<128xf32>
    %125 = vector.multi_reduction <add>, %124, %cst_45 [0] : vector<8x128xf32> to vector<128xf32>
    %126 = vector.shape_cast %125 : vector<128xf32> to vector<1x128xf32>
    %127 = arith.mulf %124, %124 : vector<8x128xf32>
    %cst_46 = arith.constant dense<0.000000e+00> : vector<128xf32>
    %128 = vector.multi_reduction <add>, %127, %cst_46 [0] : vector<8x128xf32> to vector<128xf32>
    %129 = vector.shape_cast %128 : vector<128xf32> to vector<1x128xf32>
    %cst_47 = arith.constant 1.250000e-01 : f32
    %130 = vector.broadcast %cst_47 : f32 to vector<1x128xf32>
    %131 = arith.mulf %126, %130 : vector<1x128xf32>
    %cst_48 = arith.constant 1.250000e-01 : f32
    %132 = vector.broadcast %cst_48 : f32 to vector<1x128xf32>
    %133 = arith.mulf %129, %132 : vector<1x128xf32>
    %134 = arith.mulf %131, %131 : vector<1x128xf32>
    %135 = arith.subf %133, %134 : vector<1x128xf32>
    %136 = vector.extract_strided_slice %122 {offsets = [0, 0], sizes = [1, 128], strides = [1, 1]} : vector<2x128xf32> to vector<1x128xf32>
    %cst_49 = arith.constant 9.99999974E-6 : f32
    %137 = vector.broadcast %cst_49 : f32 to vector<1x128xf32>
    %138 = arith.addf %135, %137 : vector<1x128xf32>
    %139 = math.rsqrt %138 : vector<1x128xf32>
    %140 = arith.mulf %136, %139 : vector<1x128xf32>
    %141 = vector.extract_strided_slice %122 {offsets = [1, 0], sizes = [1, 128], strides = [1, 1]} : vector<2x128xf32> to vector<1x128xf32>
    %142 = arith.mulf %131, %140 : vector<1x128xf32>
    %143 = arith.subf %141, %142 : vector<1x128xf32>
    %144 = vector.broadcast %140 : vector<1x128xf32> to vector<8x128xf32>
    %145 = arith.mulf %124, %144 : vector<8x128xf32>
    %146 = vector.broadcast %143 : vector<1x128xf32> to vector<8x128xf32>
    %147 = arith.addf %145, %146 : vector<8x128xf32>
    %148 = arith.addf %89, %147 : vector<8x128xf32>
    %c0_50 = arith.constant 0 : index
    %c0_51 = arith.constant 0 : index
    %149 = vector.load %arg6[%c0_50, %c0_51] : memref<8x128xf32, #tpu.memory_space<vmem>>, vector<8x128xf32>
    tpu.vector_store %arg6[%c0_50, %c0_51], %148 {strides = array<i32>} : memref<8x128xf32, #tpu.memory_space<vmem>>, vector<8x128xf32>,
    return
  }
}

</mosaic_0001>

<llo_original>
// kernel: tpu_custom_call.1
$region0: #{tpu_custom_call.1}
  #allocation0 [shape = 'u32[]', space=smem, size = 0x4, offset = 0x4, fixed_abs, tag = 'smem constant byte address 0x4 - core index']
  #allocation1 [shape = 'u32[144,128]{1,0:T(1,128)}', space=vmem, size = 0x12000, scoped, tag = 'internal scratch']
  %s0 = inlined_call_operand.hbm [shape: f32[8,32], index: 0, kind: input, shape index: {}]
  %s1 = inlined_call_operand.hbm [shape: bf16[34,128], index: 1, kind: input, shape index: {}]
  %s2 = inlined_call_operand.hbm [shape: bf16[130,512], index: 2, kind: input, shape index: {}]
  %s3 = inlined_call_operand.hbm [shape: bf16[514,128], index: 3, kind: input, shape index: {}]
  %s4 = inlined_call_operand.hbm [shape: bf16[130,512], index: 4, kind: input, shape index: {}]
  %s5 = inlined_call_operand.hbm [shape: bf16[514,128], index: 5, kind: input, shape index: {}]
  %s6 = inlined_call_operand.hbm [shape: f32[8,128], index: 6, kind: output, shape index: {}]
  %s7 = sld [smem:[#allocation0]]
  $region58: #{tpu_custom_call.1} parent=0
    _
  %s9 = ssub.s32 1, %s7
  %s10 = scalar_select 0, %s9, %s7
  $region1: #{tpu_custom_call.1} parent=0
    #allocation2 [shape = 'u8[4096]{0}', space=vmem, size = 0x1000, scoped, tag = 'input window, operand 0, single buffered']
    #allocation3 [shape = 's32[1]{0}', space=sflag, size = 0x4, scoped, tag = 'scoped memory for tpu_custom_call.1']
    #allocation4 [shape = 's32[1]{0}', space=sflag, size = 0x4, scoped, tag = 'scoped memory for tpu_custom_call.1']
    #allocation5 [shape = 'u8[10240]{0}', space=vmem, size = 0x2800, scoped, tag = 'input window, operand 1, single buffered']
    #allocation6 [shape = 's32[1]{0}', space=sflag, size = 0x4, scoped, tag = 'scoped memory for tpu_custom_call.1']
    #allocation7 [shape = 'u8[139264]{0}', space=vmem, size = 0x22000, scoped, tag = 'input window, operand 2, single buffered']
    #allocation8 [shape = 'u8[133120]{0}', space=vmem, size = 0x20800, scoped, tag = 'input window, operand 3, single buffered']
    #allocation9 [shape = 's32[1]{0}', space=sflag, size = 0x4, scoped, tag = 'scoped memory for tpu_custom_call.1']
    #allocation10 [shape = 'u8[139264]{0}', space=vmem, size = 0x22000, scoped, tag = 'input window, operand 4, single buffered']
    #allocation11 [shape = 'u8[133120]{0}', space=vmem, size = 0x20800, scoped, tag = 'input window, operand 5, single buffered']
    #allocation12 [shape = 's32[1]{0}', space=sflag, size = 0x4, scoped, tag = 'scoped memory for tpu_custom_call.1']
    #allocation13 [shape = 'u8[4096]{0}', space=vmem, size = 0x1000, scoped, tag = 'output window, operand 0, single buffered']
    %11 = vsyncpa [#allocation3], 0
    %12 = vsyncpa [#allocation6], 0
    %13 = vsyncpa [#allocation9], 0
    %14 = vsyncpa [#allocation12], 0
    %15 = vsyncpa [#allocation4], 0
    // Predicated region
    $region2: #{tpu_custom_call.1} parent=1 // pred_check
      _
    $region3: #{tpu_custom_call.1} parent=1 // pred_check_branch
      %17 = sbr.rel (0) target = $region5
    $region4: #{tpu_custom_call.1} parent=1 // pred_region
      %s19 = ssub.s32 128, 128
      %20 = vsyncadd [#allocation3], %s19
      %s22 = sshll.u32 [#allocation2], 4
      %s23 = int_to_ptr.vmem [resolvable:$true] %s22
      %25 = dma.hbm_to_vmem [thread:$0]  %s0, 128, %s23, [#allocation3]
    $region5: #{tpu_custom_call.1} parent=1 // pred_fallthru
      _
    // Predicated region
    $region6: #{tpu_custom_call.1} parent=1 // pred_check
      _
    $region7: #{tpu_custom_call.1} parent=1 // pred_check_branch
      %27 = sbr.rel (0) target = $region9
    $region8: #{tpu_custom_call.1} parent=1 // pred_region
      %s29 = ssub.s32 320, 320
      %30 = vsyncadd [#allocation6], %s29
      %s31 = sshll.u32 [#allocation5], 4
      %s32 = int_to_ptr.vmem [resolvable:$true] %s31
      %37 = dma.hbm_to_vmem [thread:$0]  %s1, 320, %s32, [#allocation6], 64, 64, 4
    $region9: #{tpu_custom_call.1} parent=1 // pred_fallthru
      _
    // Predicated region
    $region10: #{tpu_custom_call.1} parent=1 // pred_check
      _
    $region11: #{tpu_custom_call.1} parent=1 // pred_check_branch
      %39 = sbr.rel (0) target = $region13
    $region12: #{tpu_custom_call.1} parent=1 // pred_region
      %s41 = ssub.s32 4352, 4352
      %42 = vsyncadd [#allocation6], %s41
      %s43 = sshll.u32 [#allocation7], 4
      %s44 = int_to_ptr.vmem [resolvable:$true] %s43
      %49 = dma.hbm_to_vmem [thread:$0]  %s2, 4352, %s44, [#allocation6], 256, 256, 16
    $region13: #{tpu_custom_call.1} parent=1 // pred_fallthru
      _
    // Predicated region
    $region14: #{tpu_custom_call.1} parent=1 // pred_check
      _
    $region15: #{tpu_custom_call.1} parent=1 // pred_check_branch
      %51 = sbr.rel (0) target = $region17
    $region16: #{tpu_custom_call.1} parent=1 // pred_region
      %s53 = ssub.s32 4160, 4160
      %54 = vsyncadd [#allocation9], %s53
      %s55 = sshll.u32 [#allocation8], 4
      %s56 = int_to_ptr.vmem [resolvable:$true] %s55
      %61 = dma.hbm_to_vmem [thread:$0]  %s3, 4160, %s56, [#allocation9], 64, 64, 4
    $region17: #{tpu_custom_call.1} parent=1 // pred_fallthru
      _
    // Predicated region
    $region18: #{tpu_custom_call.1} parent=1 // pred_check
      _
    $region19: #{tpu_custom_call.1} parent=1 // pred_check_branch
      %63 = sbr.rel (0) target = $region21
    $region20: #{tpu_custom_call.1} parent=1 // pred_region
      %s65 = ssub.s32 4352, 4352
      %66 = vsyncadd [#allocation9], %s65
      %s67 = sshll.u32 [#allocation10], 4
      %s68 = int_to_ptr.vmem [resolvable:$true] %s67
      %73 = dma.hbm_to_vmem [thread:$0]  %s4, 4352, %s68, [#allocation9], 256, 256, 16
    $region21: #{tpu_custom_call.1} parent=1 // pred_fallthru
      _
    // Predicated region
    $region22: #{tpu_custom_call.1} parent=1 // pred_check
      _
    $region23: #{tpu_custom_call.1} parent=1 // pred_check_branch
      %75 = sbr.rel (0) target = $region25
    $region24: #{tpu_custom_call.1} parent=1 // pred_region
      %s77 = ssub.s32 4160, 4160
      %78 = vsyncadd [#allocation12], %s77
      %s79 = sshll.u32 [#allocation11], 4
      %s80 = int_to_ptr.vmem [resolvable:$true] %s79
      %85 = dma.hbm_to_vmem [thread:$0]  %s5, 4160, %s80, [#allocation12], 64, 64, 4
    $region25: #{tpu_custom_call.1} parent=1 // pred_fallthru
      _
    // Predicated region
    $region26: #{tpu_custom_call.1} parent=1 // pred_check
      _
    $region27: #{tpu_custom_call.1} parent=1 // pred_check_branch
      %87 = sbr.rel (0) target = $region29
    $region28: #{tpu_custom_call.1} parent=1 // pred_region
      %88 = dma.done [#allocation3], 128
    $region29: #{tpu_custom_call.1} parent=1 // pred_fallthru
      _
    // Predicated region
    $region30: #{tpu_custom_call.1} parent=1 // pred_check
      _
    $region31: #{tpu_custom_call.1} parent=1 // pred_check_branch
      %90 = sbr.rel (0) target = $region33
    $region32: #{tpu_custom_call.1} parent=1 // pred_region
      %91 = dma.done [#allocation6], 320
    $region33: #{tpu_custom_call.1} parent=1 // pred_fallthru
      _
    // Predicated region
    $region34: #{tpu_custom_call.1} parent=1 // pred_check
      _
    $region35: #{tpu_custom_call.1} parent=1 // pred_check_branch
      %93 = sbr.rel (0) target = $region37
    $region36: #{tpu_custom_call.1} parent=1 // pred_region
      %94 = dma.done [#allocation6], 4352
    $region37: #{tpu_custom_call.1} parent=1 // pred_fallthru
      _
    // Predicated region
    $region38: #{tpu_custom_call.1} parent=1 // pred_check
      _
    $region39: #{tpu_custom_call.1} parent=1 // pred_check_branch
      %96 = sbr.rel (0) target = $region41
    $region40: #{tpu_custom_call.1} parent=1 // pred_region
      %97 = dma.done [#allocation9], 4160
    $region41: #{tpu_custom_call.1} parent=1 // pred_fallthru
      _
    // Predicated region
    $region42: #{tpu_custom_call.1} parent=1 // pred_check
      _
    $region43: #{tpu_custom_call.1} parent=1 // pred_check_branch
      %99 = sbr.rel (0) target = $region45
    $region44: #{tpu_custom_call.1} parent=1 // pred_region
      %100 = dma.done [#allocation9], 4352
    $region45: #{tpu_custom_call.1} parent=1 // pred_fallthru
      _
    // Predicated region
    $region46: #{tpu_custom_call.1} parent=1 // pred_check
      _
    $region47: #{tpu_custom_call.1} parent=1 // pred_check_branch
      %102 = sbr.rel (0) target = $region49
    $region48: #{tpu_custom_call.1} parent=1 // pred_region
      %103 = dma.done [#allocation12], 4160
    $region49: #{tpu_custom_call.1} parent=1 // pred_fallthru
      _
    %v105 = vld [vmem:[#allocation2] sm:$0xff]
    %v106 = vld [vmem:[#allocation5] sm:$0xf]
    %v107 = vld [vmem:[#allocation5 + $0x4] sm:$0xf]
    %v108 = vld [vmem:[#allocation5 + $0x8] sm:$0xf]
    %v109 = vld [vmem:[#allocation5 + $0xc] sm:$0xf]
    %v110 = vld [vmem:[#allocation5 + $0x10] sm:$0x1]
    %v111 = vunpack.c.l.bf16 %v110
    %v112 = vpack.c.bf16 %v105, %v105
    %v117 = vunpack.c.l.b16 %v106
    %v118 = vunpack.c.l.b16 %v107
    %v119 = vunpack.c.l.b16 %v108
    %v120 = vunpack.c.l.b16 %v109
    %v121 = vpack.c.b16 %v118, %v117
    %v122 = vpack.c.b16 %v120, %v119
    %vm125 = vcmask 261120
    %v127 = vsel %vm125, %v112, 0
    %129 = vmatprep.subr.bf16.mxu0 0
    %130 = vmatpush1.bf16.msra.mxu0 %v121
    %131 = vmatprep.subr.bf16.mxu0 0
    %132 = vmatpush1.bf16.msra.mxu0 %v122
    %133 = vmatprep.subr.bf16.mxu0 0
    %134 = vmatpush1.bf16.msra.mxu0 0
    %135 = vmatprep.subr.bf16.mxu0 0
    %136 = vmatpush1.bf16.msra.mxu0 0
    %137 = vmatprep.subr.bf16.mxu0 0
    %138 = vmatpush1.bf16.msra.mxu0 0
    %139 = vmatprep.subr.bf16.mxu0 0
    %140 = vmatpush1.bf16.msra.mxu0 0
    %141 = vmatprep.subr.bf16.mxu0 0
    %142 = vmatpush1.bf16.msra.mxu0 0
    %143 = vmatprep.subr.bf16.mxu0 0
    %144 = vmatpush1.bf16.msra.mxu0 0
    %145 = vmatprep.subr.bf16.mxu0 0
    %146 = vmatpush1.bf16.msra.mxu0 0
    %147 = vmatprep.subr.bf16.mxu0 0
    %148 = vmatpush1.bf16.msra.mxu0 0
    %149 = vmatprep.subr.bf16.mxu0 0
    %150 = vmatpush1.bf16.msra.mxu0 0
    %151 = vmatprep.subr.bf16.mxu0 0
    %152 = vmatpush1.bf16.msra.mxu0 0
    %153 = vmatprep.subr.bf16.mxu0 0
    %154 = vmatpush1.bf16.msra.mxu0 0
    %155 = vmatprep.subr.bf16.mxu0 0
    %156 = vmatpush1.bf16.msra.mxu0 0
    %157 = vmatprep.subr.bf16.mxu0 0
    %158 = vmatpush1.bf16.msra.mxu0 0
    %159 = vmatprep.subr.bf16.mxu0 0
    %160 = vmatpush1.bf16.msra.mxu0 0
    %161 = vmatprep.mubr.bf16.mxu0 0
    %162 = vmatmul.mubr.bf16.gmra.mrb[0].mxu0 %v127
    %v163 = vpop.f32.mrb[0].mxu0
    %v164 = vadd.f32 0.0, %v163
    %v165 = vpop.f32.mrb[0].mxu0
    %v166 = vpop.f32.mrb[0].mxu0
    %v167 = vpop.f32.mrb[0].mxu0
    %168 = vdwg.mxu0
    %v169 = vrot.slane %v164, 4
    %v170 = vadd.f32 %v164, %v169
    %v171 = vrot.slane %v170, 2
    %v172 = vadd.f32 %v170, %v171
    %v173 = vrot.slane %v172, 1
    %v174 = vadd.f32 %v172, %v173
    %v175 = vmul.f32 %v164, %v164
    %v176 = vrot.slane %v175, 4
    %v177 = vadd.f32 %v175, %v176
    %v178 = vrot.slane %v177, 2
    %v179 = vadd.f32 %v177, %v178
    %v180 = vrot.slane %v179, 1
    %v181 = vadd.f32 %v179, %v180
    %v182 = vmul.f32 %v174, 0.125
    %v183 = vmul.f32 %v181, 0.125
    %v184 = vmul.f32 %v182, %v182
    %v185 = vsub.f32 %v183, %v184
    %v186 = vadd.f32 %v185, 1e-05
    %v187 = vrsqrt.pop %v186
    %v188 = vmul.f32 %v111, %v187
    %v189 = vmul.f32 %v182, %v188
    %v191 = vrot.slane %v189, 7
    %v193 = vsub.f32 %v111, %v191
    %v194 = vlaneseq
    %v195 = vshrl.u32 %v194, 7
    %v196 = vsub.s32 0, %v195
    %v197 = vrot.slane %v188, %v196
    %v198 = vmul.f32 %v164, %v197
    %v199 = vlaneseq
    %v200 = vshrl.u32 %v199, 7
    %v201 = vsub.s32 1, %v200
    %v202 = vrot.slane %v193, %v201
    %v203 = vadd.f32 %v198, %v202
    %v204 = vmax.f32 %v203, 0.0
    %v205 = vld [vmem:[#allocation7] sm:$0xff]
    %v206 = vld [vmem:[#allocation7 + $0x8] sm:$0xff]
    %v207 = vld [vmem:[#allocation7 + $0x10] sm:$0xff]
    %v208 = vld [vmem:[#allocation7 + $0x18] sm:$0xff]
    %v209 = vld [vmem:[#allocation7 + $0x20] sm:$0xff]
    %v210 = vld [vmem:[#allocation7 + $0x28] sm:$0xff]
    %v211 = vld [vmem:[#allocation7 + $0x30] sm:$0xff]
    %v212 = vld [vmem:[#allocation7 + $0x38] sm:$0xff]
    %v213 = vld [vmem:[#allocation7 + $0x40] sm:$0xff]
    %v214 = vld [vmem:[#allocation7 + $0x48] sm:$0xff]
    %v215 = vld [vmem:[#allocation7 + $0x50] sm:$0xff]
    %v216 = vld [vmem:[#allocation7 + $0x58] sm:$0xff]
    %v217 = vld [vmem:[#allocation7 + $0x60] sm:$0xff]
    %v218 = vld [vmem:[#allocation7 + $0x68] sm:$0xff]
    %v219 = vld [vmem:[#allocation7 + $0x70] sm:$0xff]
    %v220 = vld [vmem:[#allocation7 + $0x78] sm:$0xff]
    %v221 = vld [vmem:[#allocation7 + $0x80] sm:$0xff]
    %v222 = vld [vmem:[#allocation7 + $0x88] sm:$0xff]
    %v223 = vld [vmem:[#allocation7 + $0x90] sm:$0xff]
    %v224 = vld [vmem:[#allocation7 + $0x98] sm:$0xff]
    %v225 = vld [vmem:[#allocation7 + $0xa0] sm:$0xff]
    %v226 = vld [vmem:[#allocation7 + $0xa8] sm:$0xff]
    %v227 = vld [vmem:[#allocation7 + $0xb0] sm:$0xff]
    %v228 = vld [vmem:[#allocation7 + $0xb8] sm:$0xff]
    %v229 = vld [vmem:[#allocation7 + $0xc0] sm:$0xff]
    %v230 = vld [vmem:[#allocation7 + $0xc8] sm:$0xff]
    %v231 = vld [vmem:[#allocation7 + $0xd0] sm:$0xff]
    %v232 = vld [vmem:[#allocation7 + $0xd8] sm:$0xff]
    %v233 = vld [vmem:[#allocation7 + $0xe0] sm:$0xff]
    %v234 = vld [vmem:[#allocation7 + $0xe8] sm:$0xff]
    %v235 = vld [vmem:[#allocation7 + $0xf0] sm:$0xff]
    %v236 = vld [vmem:[#allocation7 + $0xf8] sm:$0xff]
    %v237 = vld [vmem:[#allocation7 + $0x100] sm:$0x11]
    %v238 = vld [vmem:[#allocation7 + $0x108] sm:$0x11]
    %v239 = vunpack.c.l.bf16 %v237
    %v240 = vunpack.c.h.bf16 %v237
    %v241 = vunpack.c.l.bf16 %v238
    %v242 = vunpack.c.h.bf16 %v238
    %v243 = vpack.c.bf16 %v204, %v204
    %v276 = vunpack.c.l.b16 %v205
    %v277 = vunpack.c.h.b16 %v205
    %v278 = vunpack.c.l.b16 %v206
    %v279 = vunpack.c.h.b16 %v206
    %v280 = vunpack.c.l.b16 %v207
    %v281 = vunpack.c.h.b16 %v207
    %v282 = vunpack.c.l.b16 %v208
    %v283 = vunpack.c.h.b16 %v208
    %v284 = vunpack.c.l.b16 %v209
    %v285 = vunpack.c.h.b16 %v209
    %v286 = vunpack.c.l.b16 %v210
    %v287 = vunpack.c.h.b16 %v210
    %v288 = vunpack.c.l.b16 %v211
    %v289 = vunpack.c.h.b16 %v211
    %v290 = vunpack.c.l.b16 %v212
    %v291 = vunpack.c.h.b16 %v212
    %v292 = vunpack.c.l.b16 %v213
    %v293 = vunpack.c.h.b16 %v213
    %v294 = vunpack.c.l.b16 %v214
    %v295 = vunpack.c.h.b16 %v214
    %v296 = vunpack.c.l.b16 %v215
    %v297 = vunpack.c.h.b16 %v215
    %v298 = vunpack.c.l.b16 %v216
    %v299 = vunpack.c.h.b16 %v216
    %v300 = vunpack.c.l.b16 %v217
    %v301 = vunpack.c.h.b16 %v217
    %v302 = vunpack.c.l.b16 %v218
    %v303 = vunpack.c.h.b16 %v218
    %v304 = vunpack.c.l.b16 %v219
    %v305 = vunpack.c.h.b16 %v219
    %v306 = vunpack.c.l.b16 %v220
    %v307 = vunpack.c.h.b16 %v220
    %v308 = vunpack.c.l.b16 %v221
    %v309 = vunpack.c.h.b16 %v221
    %v310 = vunpack.c.l.b16 %v222
    %v311 = vunpack.c.h.b16 %v222
    %v312 = vunpack.c.l.b16 %v223
    %v313 = vunpack.c.h.b16 %v223
    %v314 = vunpack.c.l.b16 %v224
    %v315 = vunpack.c.h.b16 %v224
    %v316 = vunpack.c.l.b16 %v225
    %v317 = vunpack.c.h.b16 %v225
    %v318 = vunpack.c.l.b16 %v226
    %v319 = vunpack.c.h.b16 %v226
    %v320 = vunpack.c.l.b16 %v227
    %v321 = vunpack.c.h.b16 %v227
    %v322 = vunpack.c.l.b16 %v228
    %v323 = vunpack.c.h.b16 %v228
    %v324 = vunpack.c.l.b16 %v229
    %v325 = vunpack.c.h.b16 %v229
    %v326 = vunpack.c.l.b16 %v230
    %v327 = vunpack.c.h.b16 %v230
    %v328 = vunpack.c.l.b16 %v231
    %v329 = vunpack.c.h.b16 %v231
    %v330 = vunpack.c.l.b16 %v232
    %v331 = vunpack.c.h.b16 %v232
    %v332 = vunpack.c.l.b16 %v233
    %v333 = vunpack.c.h.b16 %v233
    %v334 = vunpack.c.l.b16 %v234
    %v335 = vunpack.c.h.b16 %v234
    %v336 = vunpack.c.l.b16 %v235
    %v337 = vunpack.c.h.b16 %v235
    %v338 = vunpack.c.l.b16 %v236
    %v339 = vunpack.c.h.b16 %v236
    %v340 = vpack.c.b16 %v280, %v276
    %v341 = vpack.c.b16 %v281, %v277
    %v342 = vpack.c.b16 %v282, %v278
    %v343 = vpack.c.b16 %v283, %v279
    %v344 = vpack.c.b16 %v288, %v284
    %v345 = vpack.c.b16 %v289, %v285
    %v346 = vpack.c.b16 %v290, %v286
    %v347 = vpack.c.b16 %v291, %v287
    %v348 = vpack.c.b16 %v296, %v292
    %v349 = vpack.c.b16 %v297, %v293
    %v350 = vpack.c.b16 %v298, %v294
    %v351 = vpack.c.b16 %v299, %v295
    %v352 = vpack.c.b16 %v304, %v300
    %v353 = vpack.c.b16 %v305, %v301
    %v354 = vpack.c.b16 %v306, %v302
    %v355 = vpack.c.b16 %v307, %v303
    %v356 = vpack.c.b16 %v312, %v308
    %v357 = vpack.c.b16 %v313, %v309
    %v358 = vpack.c.b16 %v314, %v310
    %v359 = vpack.c.b16 %v315, %v311
    %v360 = vpack.c.b16 %v320, %v316
    %v361 = vpack.c.b16 %v321, %v317
    %v362 = vpack.c.b16 %v322, %v318
    %v363 = vpack.c.b16 %v323, %v319
    %v364 = vpack.c.b16 %v328, %v324
    %v365 = vpack.c.b16 %v329, %v325
    %v366 = vpack.c.b16 %v330, %v326
    %v367 = vpack.c.b16 %v331, %v327
    %v368 = vpack.c.b16 %v336, %v332
    %v369 = vpack.c.b16 %v337, %v333
    %v370 = vpack.c.b16 %v338, %v334
    %v371 = vpack.c.b16 %v339, %v335
    %404 = vmatprep.subr.bf16.mxu0 %v341
    %405 = vmatpush1.bf16.msra.mxu0 %v340
    %406 = vmatprep.subr.bf16.mxu0 %v345
    %407 = vmatpush1.bf16.msra.mxu0 %v344
    %408 = vmatprep.subr.bf16.mxu0 %v349
    %409 = vmatpush1.bf16.msra.mxu0 %v348
    %410 = vmatprep.subr.bf16.mxu0 %v353
    %411 = vmatpush1.bf16.msra.mxu0 %v352
    %412 = vmatprep.subr.bf16.mxu0 %v357
    %413 = vmatpush1.bf16.msra.mxu0 %v356
    %414 = vmatprep.subr.bf16.mxu0 %v361
    %415 = vmatpush1.bf16.msra.mxu0 %v360
    %416 = vmatprep.subr.bf16.mxu0 %v365
    %417 = vmatpush1.bf16.msra.mxu0 %v364
    %418 = vmatprep.subr.bf16.mxu0 %v369
    %419 = vmatpush1.bf16.msra.mxu0 %v368
    %420 = vmatprep.subr.bf16.mxu0 0
    %421 = vmatpush1.bf16.msra.mxu0 0
    %422 = vmatprep.subr.bf16.mxu0 0
    %423 = vmatpush1.bf16.msra.mxu0 0
    %424 = vmatprep.subr.bf16.mxu0 0
    %425 = vmatpush1.bf16.msra.mxu0 0
    %426 = vmatprep.subr.bf16.mxu0 0
    %427 = vmatpush1.bf16.msra.mxu0 0
    %428 = vmatprep.subr.bf16.mxu0 0
    %429 = vmatpush1.bf16.msra.mxu0 0
    %430 = vmatprep.subr.bf16.mxu0 0
    %431 = vmatpush1.bf16.msra.mxu0 0
    %432 = vmatprep.subr.bf16.mxu0 0
    %433 = vmatpush1.bf16.msra.mxu0 0
    %434 = vmatprep.subr.bf16.mxu0 0
    %435 = vmatpush1.bf16.msra.mxu0 0
    %436 = vmatprep.mubr.bf16.mxu0 0
    %437 = vmatmul.mubr.bf16.gmra.mrb[0].mxu0 %v243
    %v438 = vpop.f32.mrb[0].mxu0
    %v439 = vadd.f32 0.0, %v438
    %v440 = vpop.f32.mrb[0].mxu0
    %v441 = vadd.f32 0.0, %v440
    %v442 = vpop.f32.mrb[0].mxu0
    %v443 = vpop.f32.mrb[0].mxu0
    %444 = vdwg.mxu0
    %445 = vmatprep.subr.bf16.mxu0 %v343
    %446 = vmatpush1.bf16.msra.mxu0 %v342
    %447 = vmatprep.subr.bf16.mxu0 %v347
    %448 = vmatpush1.bf16.msra.mxu0 %v346
    %449 = vmatprep.subr.bf16.mxu0 %v351
    %450 = vmatpush1.bf16.msra.mxu0 %v350
    %451 = vmatprep.subr.bf16.mxu0 %v355
    %452 = vmatpush1.bf16.msra.mxu0 %v354
    %453 = vmatprep.subr.bf16.mxu0 %v359
    %454 = vmatpush1.bf16.msra.mxu0 %v358
    %455 = vmatprep.subr.bf16.mxu0 %v363
    %456 = vmatpush1.bf16.msra.mxu0 %v362
    %457 = vmatprep.subr.bf16.mxu0 %v367
    %458 = vmatpush1.bf16.msra.mxu0 %v366
    %459 = vmatprep.subr.bf16.mxu0 %v371
    %460 = vmatpush1.bf16.msra.mxu0 %v370
    %461 = vmatprep.subr.bf16.mxu0 0
    %462 = vmatpush1.bf16.msra.mxu0 0
    %463 = vmatprep.subr.bf16.mxu0 0
    %464 = vmatpush1.bf16.msra.mxu0 0
    %465 = vmatprep.subr.bf16.mxu0 0
    %466 = vmatpush1.bf16.msra.mxu0 0
    %467 = vmatprep.subr.bf16.mxu0 0
    %468 = vmatpush1.bf16.msra.mxu0 0
    %469 = vmatprep.subr.bf16.mxu0 0
    %470 = vmatpush1.bf16.msra.mxu0 0
    %471 = vmatprep.subr.bf16.mxu0 0
    %472 = vmatpush1.bf16.msra.mxu0 0
    %473 = vmatprep.subr.bf16.mxu0 0
    %474 = vmatpush1.bf16.msra.mxu0 0
    %475 = vmatprep.subr.bf16.mxu0 0
    %476 = vmatpush1.bf16.msra.mxu0 0
    %477 = vmatprep.mubr.bf16.mxu0 0
    %478 = vmatmul.mubr.bf16.gmra.mrb[0].mxu0 %v243
    %v479 = vpop.f32.mrb[0].mxu0
    %v480 = vadd.f32 0.0, %v479
    %v481 = vpop.f32.mrb[0].mxu0
    %v482 = vadd.f32 0.0, %v481
    %v483 = vpop.f32.mrb[0].mxu0
    %v484 = vpop.f32.mrb[0].mxu0
    %485 = vdwg.mxu0
    %v486 = vrot.slane %v439, 4
    %v487 = vadd.f32 %v439, %v486
    %v488 = vrot.slane %v487, 2
    %v489 = vadd.f32 %v487, %v488
    %v490 = vrot.slane %v489, 1
    %v491 = vadd.f32 %v489, %v490
    %v492 = vrot.slane %v441, 4
    %v493 = vadd.f32 %v441, %v492
    %v494 = vrot.slane %v493, 2
    %v495 = vadd.f32 %v493, %v494
    %v496 = vrot.slane %v495, 1
    %v497 = vadd.f32 %v495, %v496
    %v498 = vrot.slane %v480, 4
    %v499 = vadd.f32 %v480, %v498
    %v500 = vrot.slane %v499, 2
    %v501 = vadd.f32 %v499, %v500
    %v502 = vrot.slane %v501, 1
    %v503 = vadd.f32 %v501, %v502
    %v504 = vrot.slane %v482, 4
    %v505 = vadd.f32 %v482, %v504
    %v506 = vrot.slane %v505, 2
    %v507 = vadd.f32 %v505, %v506
    %v508 = vrot.slane %v507, 1
    %v509 = vadd.f32 %v507, %v508
    %v510 = vmul.f32 %v439, %v439
    %v511 = vmul.f32 %v441, %v441
    %v512 = vmul.f32 %v480, %v480
    %v513 = vmul.f32 %v482, %v482
    %v514 = vrot.slane %v510, 4
    %v515 = vadd.f32 %v510, %v514
    %v516 = vrot.slane %v515, 2
    %v517 = vadd.f32 %v515, %v516
    %v518 = vrot.slane %v517, 1
    %v519 = vadd.f32 %v517, %v518
    %v520 = vrot.slane %v511, 4
    %v521 = vadd.f32 %v511, %v520
    %v522 = vrot.slane %v521, 2
    %v523 = vadd.f32 %v521, %v522
    %v524 = vrot.slane %v523, 1
    %v525 = vadd.f32 %v523, %v524
    %v526 = vrot.slane %v512, 4
    %v527 = vadd.f32 %v512, %v526
    %v528 = vrot.slane %v527, 2
    %v529 = vadd.f32 %v527, %v528
    %v530 = vrot.slane %v529, 1
    %v531 = vadd.f32 %v529, %v530
    %v532 = vrot.slane %v513, 4
    %v533 = vadd.f32 %v513, %v532
    %v534 = vrot.slane %v533, 2
    %v535 = vadd.f32 %v533, %v534
    %v536 = vrot.slane %v535, 1
    %v537 = vadd.f32 %v535, %v536
    %v538 = vmul.f32 %v491, 0.125
    %v539 = vmul.f32 %v497, 0.125
    %v540 = vmul.f32 %v503, 0.125
    %v541 = vmul.f32 %v509, 0.125
    %v542 = vmul.f32 %v519, 0.125
    %v543 = vmul.f32 %v525, 0.125
    %v544 = vmul.f32 %v531, 0.125
    %v545 = vmul.f32 %v537, 0.125
    %v546 = vmul.f32 %v538, %v538
    %v547 = vmul.f32 %v539, %v539
    %v548 = vmul.f32 %v540, %v540
    %v549 = vmul.f32 %v541, %v541
    %v550 = vsub.f32 %v542, %v546
    %v551 = vsub.f32 %v543, %v547
    %v552 = vsub.f32 %v544, %v548
    %v553 = vsub.f32 %v545, %v549
    %v554 = vadd.f32 %v550, 1e-05
    %v555 = vadd.f32 %v551, 1e-05
    %v556 = vadd.f32 %v552, 1e-05
    %v557 = vadd.f32 %v553, 1e-05
    %v558 = vrsqrt.pop %v554
    %v559 = vrsqrt.pop %v555
    %v560 = vrsqrt.pop %v556
    %v561 = vrsqrt.pop %v557
    %v562 = vmul.f32 %v239, %v558
    %v563 = vmul.f32 %v240, %v559
    %v564 = vmul.f32 %v241, %v560
    %v565 = vmul.f32 %v242, %v561
    %v566 = vmul.f32 %v538, %v562
    %v567 = vmul.f32 %v539, %v563
    %v568 = vmul.f32 %v540, %v564
    %v569 = vmul.f32 %v541, %v565
    %v574 = vrot.slane %v566, 7
    %v575 = vrot.slane %v567, 7
    %v576 = vrot.slane %v568, 7
    %v577 = vrot.slane %v569, 7
    %v582 = vsub.f32 %v239, %v574
    %v583 = vsub.f32 %v240, %v575
    %v584 = vsub.f32 %v241, %v576
    %v585 = vsub.f32 %v242, %v577
    %v586 = vlaneseq
    %v587 = vshrl.u32 %v586, 7
    %v588 = vsub.s32 0, %v587
    %v589 = vrot.slane %v562, %v588
    %v590 = vlaneseq
    %v591 = vshrl.u32 %v590, 7
    %v592 = vsub.s32 0, %v591
    %v593 = vrot.slane %v563, %v592
    %v594 = vlaneseq
    %v595 = vshrl.u32 %v594, 7
    %v596 = vsub.s32 0, %v595
    %v597 = vrot.slane %v564, %v596
    %v598 = vlaneseq
    %v599 = vshrl.u32 %v598, 7
    %v600 = vsub.s32 0, %v599
    %v601 = vrot.slane %v565, %v600
    %v602 = vmul.f32 %v439, %v589
    %v603 = vmul.f32 %v441, %v593
    %v604 = vmul.f32 %v480, %v597
    %v605 = vmul.f32 %v482, %v601
    %v606 = vlaneseq
    %v607 = vshrl.u32 %v606, 7
    %v608 = vsub.s32 1, %v607
    %v609 = vrot.slane %v582, %v608
    %v610 = vlaneseq
    %v611 = vshrl.u32 %v610, 7
    %v612 = vsub.s32 1, %v611
    %v613 = vrot.slane %v583, %v612
    %v614 = vlaneseq
    %v615 = vshrl.u32 %v614, 7
    %v616 = vsub.s32 1, %v615
    %v617 = vrot.slane %v584, %v616
    %v618 = vlaneseq
    %v619 = vshrl.u32 %v618, 7
    %v620 = vsub.s32 1, %v619
    %v621 = vrot.slane %v585, %v620
    %v622 = vadd.f32 %v602, %v609
    %v623 = vadd.f32 %v603, %v613
    %v624 = vadd.f32 %v604, %v617
    %v625 = vadd.f32 %v605, %v621
    %v626 = vmax.f32 %v622, 0.0
    %v627 = vmax.f32 %v623, 0.0
    %v628 = vmax.f32 %v624, 0.0
    %v629 = vmax.f32 %v625, 0.0
    %v630 = vld [vmem:[#allocation8] sm:$0xf]
    %v631 = vld [vmem:[#allocation8 + $0x4] sm:$0xf]
    %v632 = vld [vmem:[#allocation8 + $0x8] sm:$0xf]
    %v633 = vld [vmem:[#allocation8 + $0xc] sm:$0xf]
    %v634 = vld [vmem:[#allocation8 + $0x10] sm:$0xf]
    %v635 = vld [vmem:[#allocation8 + $0x14] sm:$0xf]
    %v636 = vld [vmem:[#allocation8 + $0x18] sm:$0xf]
    %v637 = vld [vmem:[#allocation8 + $0x1c] sm:$0xf]
    %v638 = vld [vmem:[#allocation8 + $0x20] sm:$0xf]
    %v639 = vld [vmem:[#allocation8 + $0x24] sm:$0xf]
    %v640 = vld [vmem:[#allocation8 + $0x28] sm:$0xf]
    %v641 = vld [vmem:[#allocation8 + $0x2c] sm:$0xf]
    %v642 = vld [vmem:[#allocation8 + $0x30] sm:$0xf]
    %v643 = vld [vmem:[#allocation8 + $0x34] sm:$0xf]
    %v644 = vld [vmem:[#allocation8 + $0x38] sm:$0xf]
    %v645 = vld [vmem:[#allocation8 + $0x3c] sm:$0xf]
    %v646 = vld [vmem:[#allocation8 + $0x40] sm:$0xf]
    %v647 = vld [vmem:[#allocation8 + $0x44] sm:$0xf]
    %v648 = vld [vmem:[#allocation8 + $0x48] sm:$0xf]
    %v649 = vld [vmem:[#allocation8 + $0x4c] sm:$0xf]
    %v650 = vld [vmem:[#allocation8 + $0x50] sm:$0xf]
    %v651 = vld [vmem:[#allocation8 + $0x54] sm:$0xf]
    %v652 = vld [vmem:[#allocation8 + $0x58] sm:$0xf]
    %v653 = vld [vmem:[#allocation8 + $0x5c] sm:$0xf]
    %v654 = vld [vmem:[#allocation8 + $0x60] sm:$0xf]
    %v655 = vld [vmem:[#allocation8 + $0x64] sm:$0xf]
    %v656 = vld [vmem:[#allocation8 + $0x68] sm:$0xf]
    %v657 = vld [vmem:[#allocation8 + $0x6c] sm:$0xf]
    %v658 = vld [vmem:[#allocation8 + $0x70] sm:$0xf]
    %v659 = vld [vmem:[#allocation8 + $0x74] sm:$0xf]
    %v660 = vld [vmem:[#allocation8 + $0x78] sm:$0xf]
    %v661 = vld [vmem:[#allocation8 + $0x7c] sm:$0xf]
    %v662 = vld [vmem:[#allocation8 + $0x80] sm:$0xf]
    %v663 = vld [vmem:[#allocation8 + $0x84] sm:$0xf]
    %v664 = vld [vmem:[#allocation8 + $0x88] sm:$0xf]
    %v665 = vld [vmem:[#allocation8 + $0x8c] sm:$0xf]
    %v666 = vld [vmem:[#allocation8 + $0x90] sm:$0xf]
    %v667 = vld [vmem:[#allocation8 + $0x94] sm:$0xf]
    %v668 = vld [vmem:[#allocation8 + $0x98] sm:$0xf]
    %v669 = vld [vmem:[#allocation8 + $0x9c] sm:$0xf]
    %v670 = vld [vmem:[#allocation8 + $0xa0] sm:$0xf]
    %v671 = vld [vmem:[#allocation8 + $0xa4] sm:$0xf]
    %v672 = vld [vmem:[#allocation8 + $0xa8] sm:$0xf]
    %v673 = vld [vmem:[#allocation8 + $0xac] sm:$0xf]
    %v674 = vld [vmem:[#allocation8 + $0xb0] sm:$0xf]
    %v675 = vld [vmem:[#allocation8 + $0xb4] sm:$0xf]
    %v676 = vld [vmem:[#allocation8 + $0xb8] sm:$0xf]
    %v677 = vld [vmem:[#allocation8 + $0xbc] sm:$0xf]
    %v678 = vld [vmem:[#allocation8 + $0xc0] sm:$0xf]
    %v679 = vld [vmem:[#allocation8 + $0xc4] sm:$0xf]
    %v680 = vld [vmem:[#allocation8 + $0xc8] sm:$0xf]
    %v681 = vld [vmem:[#allocation8 + $0xcc] sm:$0xf]
    %v682 = vld [vmem:[#allocation8 + $0xd0] sm:$0xf]
    %v683 = vld [vmem:[#allocation8 + $0xd4] sm:$0xf]
    %v684 = vld [vmem:[#allocation8 + $0xd8] sm:$0xf]
    %v685 = vld [vmem:[#allocation8 + $0xdc] sm:$0xf]
    %v686 = vld [vmem:[#allocation8 + $0xe0] sm:$0xf]
    %v687 = vld [vmem:[#allocation8 + $0xe4] sm:$0xf]
    %v688 = vld [vmem:[#allocation8 + $0xe8] sm:$0xf]
    %v689 = vld [vmem:[#allocation8 + $0xec] sm:$0xf]
    %v690 = vld [vmem:[#allocation8 + $0xf0] sm:$0xf]
    %v691 = vld [vmem:[#allocation8 + $0xf4] sm:$0xf]
    %v692 = vld [vmem:[#allocation8 + $0xf8] sm:$0xf]
    %v693 = vld [vmem:[#allocation8 + $0xfc] sm:$0xf]
    %v694 = vld [vmem:[#allocation8 + $0x100] sm:$0x1]
    %v695 = vunpack.c.l.bf16 %v694
    %v696 = vpack.c.bf16 %v626, %v626
    %v697 = vpack.c.bf16 %v627, %v627
    %v698 = vpack.c.bf16 %v628, %v628
    %v699 = vpack.c.bf16 %v629, %v629
    %v764 = vunpack.c.l.b16 %v630
    %v765 = vunpack.c.l.b16 %v631
    %v766 = vunpack.c.l.b16 %v632
    %v767 = vunpack.c.l.b16 %v633
    %v768 = vunpack.c.l.b16 %v634
    %v769 = vunpack.c.l.b16 %v635
    %v770 = vunpack.c.l.b16 %v636
    %v771 = vunpack.c.l.b16 %v637
    %v772 = vunpack.c.l.b16 %v638
    %v773 = vunpack.c.l.b16 %v639
    %v774 = vunpack.c.l.b16 %v640
    %v775 = vunpack.c.l.b16 %v641
    %v776 = vunpack.c.l.b16 %v642
    %v777 = vunpack.c.l.b16 %v643
    %v778 = vunpack.c.l.b16 %v644
    %v779 = vunpack.c.l.b16 %v645
    %v780 = vunpack.c.l.b16 %v646
    %v781 = vunpack.c.l.b16 %v647
    %v782 = vunpack.c.l.b16 %v648
    %v783 = vunpack.c.l.b16 %v649
    %v784 = vunpack.c.l.b16 %v650
    %v785 = vunpack.c.l.b16 %v651
    %v786 = vunpack.c.l.b16 %v652
    %v787 = vunpack.c.l.b16 %v653
    %v788 = vunpack.c.l.b16 %v654
    %v789 = vunpack.c.l.b16 %v655
    %v790 = vunpack.c.l.b16 %v656
    %v791 = vunpack.c.l.b16 %v657
    %v792 = vunpack.c.l.b16 %v658
    %v793 = vunpack.c.l.b16 %v659
    %v794 = vunpack.c.l.b16 %v660
    %v795 = vunpack.c.l.b16 %v661
    %v796 = vunpack.c.l.b16 %v662
    %v797 = vunpack.c.l.b16 %v663
    %v798 = vunpack.c.l.b16 %v664
    %v799 = vunpack.c.l.b16 %v665
    %v800 = vunpack.c.l.b16 %v666
    %v801 = vunpack.c.l.b16 %v667
    %v802 = vunpack.c.l.b16 %v668
    %v803 = vunpack.c.l.b16 %v669
    %v804 = vunpack.c.l.b16 %v670
    %v805 = vunpack.c.l.b16 %v671
    %v806 = vunpack.c.l.b16 %v672
    %v807 = vunpack.c.l.b16 %v673
    %v808 = vunpack.c.l.b16 %v674
    %v809 = vunpack.c.l.b16 %v675
    %v810 = vunpack.c.l.b16 %v676
    %v811 = vunpack.c.l.b16 %v677
    %v812 = vunpack.c.l.b16 %v678
    %v813 = vunpack.c.l.b16 %v679
    %v814 = vunpack.c.l.b16 %v680
    %v815 = vunpack.c.l.b16 %v681
    %v816 = vunpack.c.l.b16 %v682
    %v817 = vunpack.c.l.b16 %v683
    %v818 = vunpack.c.l.b16 %v684
    %v819 = vunpack.c.l.b16 %v685
    %v820 = vunpack.c.l.b16 %v686
    %v821 = vunpack.c.l.b16 %v687
    %v822 = vunpack.c.l.b16 %v688
    %v823 = vunpack.c.l.b16 %v689
    %v824 = vunpack.c.l.b16 %v690
    %v825 = vunpack.c.l.b16 %v691
    %v826 = vunpack.c.l.b16 %v692
    %v827 = vunpack.c.l.b16 %v693
    %v828 = vpack.c.b16 %v765, %v764
    %v829 = vpack.c.b16 %v767, %v766
    %v830 = vpack.c.b16 %v769, %v768
    %v831 = vpack.c.b16 %v771, %v770
    %v832 = vpack.c.b16 %v773, %v772
    %v833 = vpack.c.b16 %v775, %v774
    %v834 = vpack.c.b16 %v777, %v776
    %v835 = vpack.c.b16 %v779, %v778
    %v836 = vpack.c.b16 %v781, %v780
    %v837 = vpack.c.b16 %v783, %v782
    %v838 = vpack.c.b16 %v785, %v784
    %v839 = vpack.c.b16 %v787, %v786
    %v840 = vpack.c.b16 %v789, %v788
    %v841 = vpack.c.b16 %v791, %v790
    %v842 = vpack.c.b16 %v793, %v792
    %v843 = vpack.c.b16 %v795, %v794
    %v844 = vpack.c.b16 %v797, %v796
    %v845 = vpack.c.b16 %v799, %v798
    %v846 = vpack.c.b16 %v801, %v800
    %v847 = vpack.c.b16 %v803, %v802
    %v848 = vpack.c.b16 %v805, %v804
    %v849 = vpack.c.b16 %v807, %v806
    %v850 = vpack.c.b16 %v809, %v808
    %v851 = vpack.c.b16 %v811, %v810
    %v852 = vpack.c.b16 %v813, %v812
    %v853 = vpack.c.b16 %v815, %v814
    %v854 = vpack.c.b16 %v817, %v816
    %v855 = vpack.c.b16 %v819, %v818
    %v856 = vpack.c.b16 %v821, %v820
    %v857 = vpack.c.b16 %v823, %v822
    %v858 = vpack.c.b16 %v825, %v824
    %v859 = vpack.c.b16 %v827, %v826
    %892 = vmatprep.subr.bf16.mxu0 0
    %893 = vmatpush1.bf16.msra.mxu0 %v828
    %894 = vmatprep.subr.bf16.mxu0 0
    %895 = vmatpush1.bf16.msra.mxu0 %v829
    %896 = vmatprep.subr.bf16.mxu0 0
    %897 = vmatpush1.bf16.msra.mxu0 %v830
    %898 = vmatprep.subr.bf16.mxu0 0
    %899 = vmatpush1.bf16.msra.mxu0 %v831
    %900 = vmatprep.subr.bf16.mxu0 0
    %901 = vmatpush1.bf16.msra.mxu0 %v832
    %902 = vmatprep.subr.bf16.mxu0 0
    %903 = vmatpush1.bf16.msra.mxu0 %v833
    %904 = vmatprep.subr.bf16.mxu0 0
    %905 = vmatpush1.bf16.msra.mxu0 %v834
    %906 = vmatprep.subr.bf16.mxu0 0
    %907 = vmatpush1.bf16.msra.mxu0 %v835
    %908 = vmatprep.subr.bf16.mxu0 0
    %909 = vmatpush1.bf16.msra.mxu0 %v836
    %910 = vmatprep.subr.bf16.mxu0 0
    %911 = vmatpush1.bf16.msra.mxu0 %v837
    %912 = vmatprep.subr.bf16.mxu0 0
    %913 = vmatpush1.bf16.msra.mxu0 %v838
    %914 = vmatprep.subr.bf16.mxu0 0
    %915 = vmatpush1.bf16.msra.mxu0 %v839
    %916 = vmatprep.subr.bf16.mxu0 0
    %917 = vmatpush1.bf16.msra.mxu0 %v840
    %918 = vmatprep.subr.bf16.mxu0 0
    %919 = vmatpush1.bf16.msra.mxu0 %v841
    %920 = vmatprep.subr.bf16.mxu0 0
    %921 = vmatpush1.bf16.msra.mxu0 %v842
    %922 = vmatprep.subr.bf16.mxu0 0
    %923 = vmatpush1.bf16.msra.mxu0 %v843
    %924 = vmatprep.mubr.bf16.mxu0 %v697
    %925 = vmatmul.mubr.bf16.gmra.mrb[0].mxu0 %v696
    %v926 = vpop.f32.mrb[0].mxu0
    %v927 = vadd.f32 0.0, %v926
    %v928 = vpop.f32.mrb[0].mxu0
    %v929 = vpop.f32.mrb[0].mxu0
    %v930 = vpop.f32.mrb[0].mxu0
    %931 = vdwg.mxu0
    %932 = vmatprep.subr.bf16.mxu0 0
    %933 = vmatpush1.bf16.msra.mxu0 %v844
    %934 = vmatprep.subr.bf16.mxu0 0
    %935 = vmatpush1.bf16.msra.mxu0 %v845
    %936 = vmatprep.subr.bf16.mxu0 0
    %937 = vmatpush1.bf16.msra.mxu0 %v846
    %938 = vmatprep.subr.bf16.mxu0 0
    %939 = vmatpush1.bf16.msra.mxu0 %v847
    %940 = vmatprep.subr.bf16.mxu0 0
    %941 = vmatpush1.bf16.msra.mxu0 %v848
    %942 = vmatprep.subr.bf16.mxu0 0
    %943 = vmatpush1.bf16.msra.mxu0 %v849
    %944 = vmatprep.subr.bf16.mxu0 0
    %945 = vmatpush1.bf16.msra.mxu0 %v850
    %946 = vmatprep.subr.bf16.mxu0 0
    %947 = vmatpush1.bf16.msra.mxu0 %v851
    %948 = vmatprep.subr.bf16.mxu0 0
    %949 = vmatpush1.bf16.msra.mxu0 %v852
    %950 = vmatprep.subr.bf16.mxu0 0
    %951 = vmatpush1.bf16.msra.mxu0 %v853
    %952 = vmatprep.subr.bf16.mxu0 0
    %953 = vmatpush1.bf16.msra.mxu0 %v854
    %954 = vmatprep.subr.bf16.mxu0 0
    %955 = vmatpush1.bf16.msra.mxu0 %v855
    %956 = vmatprep.subr.bf16.mxu0 0
    %957 = vmatpush1.bf16.msra.mxu0 %v856
    %958 = vmatprep.subr.bf16.mxu0 0
    %959 = vmatpush1.bf16.msra.mxu0 %v857
    %960 = vmatprep.subr.bf16.mxu0 0
    %961 = vmatpush1.bf16.msra.mxu0 %v858
    %962 = vmatprep.subr.bf16.mxu0 0
    %963 = vmatpush1.bf16.msra.mxu0 %v859
    %964 = vmatprep.mubr.bf16.mxu0 %v699
    %965 = vmatmul.mubr.bf16.gmra.mrb[0].mxu0 %v698
    %v966 = vpop.f32.mrb[0].mxu0
    %v967 = vadd.f32 %v927, %v966
    %v968 = vpop.f32.mrb[0].mxu0
    %v969 = vpop.f32.mrb[0].mxu0
    %v970 = vpop.f32.mrb[0].mxu0
    %971 = vdwg.mxu0
    %v972 = vrot.slane %v967, 4
    %v973 = vadd.f32 %v967, %v972
    %v974 = vrot.slane %v973, 2
    %v975 = vadd.f32 %v973, %v974
    %v976 = vrot.slane %v975, 1
    %v977 = vadd.f32 %v975, %v976
    %v978 = vmul.f32 %v967, %v967
    %v979 = vrot.slane %v978, 4
    %v980 = vadd.f32 %v978, %v979
    %v981 = vrot.slane %v980, 2
    %v982 = vadd.f32 %v980, %v981
    %v983 = vrot.slane %v982, 1
    %v984 = vadd.f32 %v982, %v983
    %v985 = vmul.f32 %v977, 0.125
    %v986 = vmul.f32 %v984, 0.125
    %v987 = vmul.f32 %v985, %v985
    %v988 = vsub.f32 %v986, %v987
    %v989 = vadd.f32 %v988, 1e-05
    %v990 = vrsqrt.pop %v989
    %v991 = vmul.f32 %v695, %v990
    %v992 = vmul.f32 %v985, %v991
    %v994 = vrot.slane %v992, 7
    %v996 = vsub.f32 %v695, %v994
    %v997 = vlaneseq
    %v998 = vshrl.u32 %v997, 7
    %v999 = vsub.s32 0, %v998
    %v1000 = vrot.slane %v991, %v999
    %v1001 = vmul.f32 %v967, %v1000
    %v1002 = vlaneseq
    %v1003 = vshrl.u32 %v1002, 7
    %v1004 = vsub.s32 1, %v1003
    %v1005 = vrot.slane %v996, %v1004
    %v1006 = vadd.f32 %v1001, %v1005
    %v1007 = vadd.f32 %v204, %v1006
    %v1008 = vld [vmem:[#allocation10] sm:$0xff]
    %v1009 = vld [vmem:[#allocation10 + $0x8] sm:$0xff]
    %v1010 = vld [vmem:[#allocation10 + $0x10] sm:$0xff]
    %v1011 = vld [vmem:[#allocation10 + $0x18] sm:$0xff]
    %v1012 = vld [vmem:[#allocation10 + $0x20] sm:$0xff]
    %v1013 = vld [vmem:[#allocation10 + $0x28] sm:$0xff]
    %v1014 = vld [vmem:[#allocation10 + $0x30] sm:$0xff]
    %v1015 = vld [vmem:[#allocation10 + $0x38] sm:$0xff]
    %v1016 = vld [vmem:[#allocation10 + $0x40] sm:$0xff]
    %v1017 = vld [vmem:[#allocation10 + $0x48] sm:$0xff]
    %v1018 = vld [vmem:[#allocation10 + $0x50] sm:$0xff]
    %v1019 = vld [vmem:[#allocation10 + $0x58] sm:$0xff]
    %v1020 = vld [vmem:[#allocation10 + $0x60] sm:$0xff]
    %v1021 = vld [vmem:[#allocation10 + $0x68] sm:$0xff]
    %v1022 = vld [vmem:[#allocation10 + $0x70] sm:$0xff]
    %v1023 = vld [vmem:[#allocation10 + $0x78] sm:$0xff]
    %v1024 = vld [vmem:[#allocation10 + $0x80] sm:$0xff]
    %v1025 = vld [vmem:[#allocation10 + $0x88] sm:$0xff]
    %v1026 = vld [vmem:[#allocation10 + $0x90] sm:$0xff]
    %v1027 = vld [vmem:[#allocation10 + $0x98] sm:$0xff]
    %v1028 = vld [vmem:[#allocation10 + $0xa0] sm:$0xff]
    %v1029 = vld [vmem:[#allocation10 + $0xa8] sm:$0xff]
    %v1030 = vld [vmem:[#allocation10 + $0xb0] sm:$0xff]
    %v1031 = vld [vmem:[#allocation10 + $0xb8] sm:$0xff]
    %v1032 = vld [vmem:[#allocation10 + $0xc0] sm:$0xff]
    %v1033 = vld [vmem:[#allocation10 + $0xc8] sm:$0xff]
    %v1034 = vld [vmem:[#allocation10 + $0xd0] sm:$0xff]
    %v1035 = vld [vmem:[#allocation10 + $0xd8] sm:$0xff]
    %v1036 = vld [vmem:[#allocation10 + $0xe0] sm:$0xff]
    %v1037 = vld [vmem:[#allocation10 + $0xe8] sm:$0xff]
    %v1038 = vld [vmem:[#allocation10 + $0xf0] sm:$0xff]
    %v1039 = vld [vmem:[#allocation10 + $0xf8] sm:$0xff]
    %v1040 = vld [vmem:[#allocation10 + $0x100] sm:$0x11]
    %v1041 = vld [vmem:[#allocation10 + $0x108] sm:$0x11]
    %v1042 = vunpack.c.l.bf16 %v1040
    %v1043 = vunpack.c.h.bf16 %v1040
    %v1044 = vunpack.c.l.bf16 %v1041
    %v1045 = vunpack.c.h.bf16 %v1041
    %v1046 = vpack.c.bf16 %v1007, %v1007
    %v1079 = vunpack.c.l.b16 %v1008
    %v1080 = vunpack.c.h.b16 %v1008
    %v1081 = vunpack.c.l.b16 %v1009
    %v1082 = vunpack.c.h.b16 %v1009
    %v1083 = vunpack.c.l.b16 %v1010
    %v1084 = vunpack.c.h.b16 %v1010
    %v1085 = vunpack.c.l.b16 %v1011
    %v1086 = vunpack.c.h.b16 %v1011
    %v1087 = vunpack.c.l.b16 %v1012
    %v1088 = vunpack.c.h.b16 %v1012
    %v1089 = vunpack.c.l.b16 %v1013
    %v1090 = vunpack.c.h.b16 %v1013
    %v1091 = vunpack.c.l.b16 %v1014
    %v1092 = vunpack.c.h.b16 %v1014
    %v1093 = vunpack.c.l.b16 %v1015
    %v1094 = vunpack.c.h.b16 %v1015
    %v1095 = vunpack.c.l.b16 %v1016
    %v1096 = vunpack.c.h.b16 %v1016
    %v1097 = vunpack.c.l.b16 %v1017
    %v1098 = vunpack.c.h.b16 %v1017
    %v1099 = vunpack.c.l.b16 %v1018
    %v1100 = vunpack.c.h.b16 %v1018
    %v1101 = vunpack.c.l.b16 %v1019
    %v1102 = vunpack.c.h.b16 %v1019
    %v1103 = vunpack.c.l.b16 %v1020
    %v1104 = vunpack.c.h.b16 %v1020
    %v1105 = vunpack.c.l.b16 %v1021
    %v1106 = vunpack.c.h.b16 %v1021
    %v1107 = vunpack.c.l.b16 %v1022
    %v1108 = vunpack.c.h.b16 %v1022
    %v1109 = vunpack.c.l.b16 %v1023
    %v1110 = vunpack.c.h.b16 %v1023
    %v1111 = vunpack.c.l.b16 %v1024
    %v1112 = vunpack.c.h.b16 %v1024
    %v1113 = vunpack.c.l.b16 %v1025
    %v1114 = vunpack.c.h.b16 %v1025
    %v1115 = vunpack.c.l.b16 %v1026
    %v1116 = vunpack.c.h.b16 %v1026
    %v1117 = vunpack.c.l.b16 %v1027
    %v1118 = vunpack.c.h.b16 %v1027
    %v1119 = vunpack.c.l.b16 %v1028
    %v1120 = vunpack.c.h.b16 %v1028
    %v1121 = vunpack.c.l.b16 %v1029
    %v1122 = vunpack.c.h.b16 %v1029
    %v1123 = vunpack.c.l.b16 %v1030
    %v1124 = vunpack.c.h.b16 %v1030
    %v1125 = vunpack.c.l.b16 %v1031
    %v1126 = vunpack.c.h.b16 %v1031
    %v1127 = vunpack.c.l.b16 %v1032
    %v1128 = vunpack.c.h.b16 %v1032
    %v1129 = vunpack.c.l.b16 %v1033
    %v1130 = vunpack.c.h.b16 %v1033
    %v1131 = vunpack.c.l.b16 %v1034
    %v1132 = vunpack.c.h.b16 %v1034
    %v1133 = vunpack.c.l.b16 %v1035
    %v1134 = vunpack.c.h.b16 %v1035
    %v1135 = vunpack.c.l.b16 %v1036
    %v1136 = vunpack.c.h.b16 %v1036
    %v1137 = vunpack.c.l.b16 %v1037
    %v1138 = vunpack.c.h.b16 %v1037
    %v1139 = vunpack.c.l.b16 %v1038
    %v1140 = vunpack.c.h.b16 %v1038
    %v1141 = vunpack.c.l.b16 %v1039
    %v1142 = vunpack.c.h.b16 %v1039
    %v1143 = vpack.c.b16 %v1083, %v1079
    %v1144 = vpack.c.b16 %v1084, %v1080
    %v1145 = vpack.c.b16 %v1085, %v1081
    %v1146 = vpack.c.b16 %v1086, %v1082
    %v1147 = vpack.c.b16 %v1091, %v1087
    %v1148 = vpack.c.b16 %v1092, %v1088
    %v1149 = vpack.c.b16 %v1093, %v1089
    %v1150 = vpack.c.b16 %v1094, %v1090
    %v1151 = vpack.c.b16 %v1099, %v1095
    %v1152 = vpack.c.b16 %v1100, %v1096
    %v1153 = vpack.c.b16 %v1101, %v1097
    %v1154 = vpack.c.b16 %v1102, %v1098
    %v1155 = vpack.c.b16 %v1107, %v1103
    %v1156 = vpack.c.b16 %v1108, %v1104
    %v1157 = vpack.c.b16 %v1109, %v1105
    %v1158 = vpack.c.b16 %v1110, %v1106
    %v1159 = vpack.c.b16 %v1115, %v1111
    %v1160 = vpack.c.b16 %v1116, %v1112
    %v1161 = vpack.c.b16 %v1117, %v1113
    %v1162 = vpack.c.b16 %v1118, %v1114
    %v1163 = vpack.c.b16 %v1123, %v1119
    %v1164 = vpack.c.b16 %v1124, %v1120
    %v1165 = vpack.c.b16 %v1125, %v1121
    %v1166 = vpack.c.b16 %v1126, %v1122
    %v1167 = vpack.c.b16 %v1131, %v1127
    %v1168 = vpack.c.b16 %v1132, %v1128
    %v1169 = vpack.c.b16 %v1133, %v1129
    %v1170 = vpack.c.b16 %v1134, %v1130
    %v1171 = vpack.c.b16 %v1139, %v1135
    %v1172 = vpack.c.b16 %v1140, %v1136
    %v1173 = vpack.c.b16 %v1141, %v1137
    %v1174 = vpack.c.b16 %v1142, %v1138
    %1207 = vmatprep.subr.bf16.mxu0 %v1144
    %1208 = vmatpush1.bf16.msra.mxu0 %v1143
    %1209 = vmatprep.subr.bf16.mxu0 %v1148
    %1210 = vmatpush1.bf16.msra.mxu0 %v1147
    %1211 = vmatprep.subr.bf16.mxu0 %v1152
    %1212 = vmatpush1.bf16.msra.mxu0 %v1151
    %1213 = vmatprep.subr.bf16.mxu0 %v1156
    %1214 = vmatpush1.bf16.msra.mxu0 %v1155
    %1215 = vmatprep.subr.bf16.mxu0 %v1160
    %1216 = vmatpush1.bf16.msra.mxu0 %v1159
    %1217 = vmatprep.subr.bf16.mxu0 %v1164
    %1218 = vmatpush1.bf16.msra.mxu0 %v1163
    %1219 = vmatprep.subr.bf16.mxu0 %v1168
    %1220 = vmatpush1.bf16.msra.mxu0 %v1167
    %1221 = vmatprep.subr.bf16.mxu0 %v1172
    %1222 = vmatpush1.bf16.msra.mxu0 %v1171
    %1223 = vmatprep.subr.bf16.mxu0 0
    %1224 = vmatpush1.bf16.msra.mxu0 0
    %1225 = vmatprep.subr.bf16.mxu0 0
    %1226 = vmatpush1.bf16.msra.mxu0 0
    %1227 = vmatprep.subr.bf16.mxu0 0
    %1228 = vmatpush1.bf16.msra.mxu0 0
    %1229 = vmatprep.subr.bf16.mxu0 0
    %1230 = vmatpush1.bf16.msra.mxu0 0
    %1231 = vmatprep.subr.bf16.mxu0 0
    %1232 = vmatpush1.bf16.msra.mxu0 0
    %1233 = vmatprep.subr.bf16.mxu0 0
    %1234 = vmatpush1.bf16.msra.mxu0 0
    %1235 = vmatprep.subr.bf16.mxu0 0
    %1236 = vmatpush1.bf16.msra.mxu0 0
    %1237 = vmatprep.subr.bf16.mxu0 0
    %1238 = vmatpush1.bf16.msra.mxu0 0
    %1239 = vmatprep.mubr.bf16.mxu0 0
    %1240 = vmatmul.mubr.bf16.gmra.mrb[0].mxu0 %v1046
    %v1241 = vpop.f32.mrb[0].mxu0
    %v1242 = vadd.f32 0.0, %v1241
    %v1243 = vpop.f32.mrb[0].mxu0
    %v1244 = vadd.f32 0.0, %v1243
    %v1245 = vpop.f32.mrb[0].mxu0
    %v1246 = vpop.f32.mrb[0].mxu0
    %1247 = vdwg.mxu0
    %1248 = vmatprep.subr.bf16.mxu0 %v1146
    %1249 = vmatpush1.bf16.msra.mxu0 %v1145
    %1250 = vmatprep.subr.bf16.mxu0 %v1150
    %1251 = vmatpush1.bf16.msra.mxu0 %v1149
    %1252 = vmatprep.subr.bf16.mxu0 %v1154
    %1253 = vmatpush1.bf16.msra.mxu0 %v1153
    %1254 = vmatprep.subr.bf16.mxu0 %v1158
    %1255 = vmatpush1.bf16.msra.mxu0 %v1157
    %1256 = vmatprep.subr.bf16.mxu0 %v1162
    %1257 = vmatpush1.bf16.msra.mxu0 %v1161
    %1258 = vmatprep.subr.bf16.mxu0 %v1166
    %1259 = vmatpush1.bf16.msra.mxu0 %v1165
    %1260 = vmatprep.subr.bf16.mxu0 %v1170
    %1261 = vmatpush1.bf16.msra.mxu0 %v1169
    %1262 = vmatprep.subr.bf16.mxu0 %v1174
    %1263 = vmatpush1.bf16.msra.mxu0 %v1173
    %1264 = vmatprep.subr.bf16.mxu0 0
    %1265 = vmatpush1.bf16.msra.mxu0 0
    %1266 = vmatprep.subr.bf16.mxu0 0
    %1267 = vmatpush1.bf16.msra.mxu0 0
    %1268 = vmatprep.subr.bf16.mxu0 0
    %1269 = vmatpush1.bf16.msra.mxu0 0
    %1270 = vmatprep.subr.bf16.mxu0 0
    %1271 = vmatpush1.bf16.msra.mxu0 0
    %1272 = vmatprep.subr.bf16.mxu0 0
    %1273 = vmatpush1.bf16.msra.mxu0 0
    %1274 = vmatprep.subr.bf16.mxu0 0
    %1275 = vmatpush1.bf16.msra.mxu0 0
    %1276 = vmatprep.subr.bf16.mxu0 0
    %1277 = vmatpush1.bf16.msra.mxu0 0
    %1278 = vmatprep.subr.bf16.mxu0 0
    %1279 = vmatpush1.bf16.msra.mxu0 0
    %1280 = vmatprep.mubr.bf16.mxu0 0
    %1281 = vmatmul.mubr.bf16.gmra.mrb[0].mxu0 %v1046
    %v1282 = vpop.f32.mrb[0].mxu0
    %v1283 = vadd.f32 0.0, %v1282
    %v1284 = vpop.f32.mrb[0].mxu0
    %v1285 = vadd.f32 0.0, %v1284
    %v1286 = vpop.f32.mrb[0].mxu0
    %v1287 = vpop.f32.mrb[0].mxu0
    %1288 = vdwg.mxu0
    %v1289 = vrot.slane %v1242, 4
    %v1290 = vadd.f32 %v1242, %v1289
    %v1291 = vrot.slane %v1290, 2
    %v1292 = vadd.f32 %v1290, %v1291
    %v1293 = vrot.slane %v1292, 1
    %v1294 = vadd.f32 %v1292, %v1293
    %v1295 = vrot.slane %v1244, 4
    %v1296 = vadd.f32 %v1244, %v1295
    %v1297 = vrot.slane %v1296, 2
    %v1298 = vadd.f32 %v1296, %v1297
    %v1299 = vrot.slane %v1298, 1
    %v1300 = vadd.f32 %v1298, %v1299
    %v1301 = vrot.slane %v1283, 4
    %v1302 = vadd.f32 %v1283, %v1301
    %v1303 = vrot.slane %v1302, 2
    %v1304 = vadd.f32 %v1302, %v1303
    %v1305 = vrot.slane %v1304, 1
    %v1306 = vadd.f32 %v1304, %v1305
    %v1307 = vrot.slane %v1285, 4
    %v1308 = vadd.f32 %v1285, %v1307
    %v1309 = vrot.slane %v1308, 2
    %v1310 = vadd.f32 %v1308, %v1309
    %v1311 = vrot.slane %v1310, 1
    %v1312 = vadd.f32 %v1310, %v1311
    %v1313 = vmul.f32 %v1242, %v1242
    %v1314 = vmul.f32 %v1244, %v1244
    %v1315 = vmul.f32 %v1283, %v1283
    %v1316 = vmul.f32 %v1285, %v1285
    %v1317 = vrot.slane %v1313, 4
    %v1318 = vadd.f32 %v1313, %v1317
    %v1319 = vrot.slane %v1318, 2
    %v1320 = vadd.f32 %v1318, %v1319
    %v1321 = vrot.slane %v1320, 1
    %v1322 = vadd.f32 %v1320, %v1321
    %v1323 = vrot.slane %v1314, 4
    %v1324 = vadd.f32 %v1314, %v1323
    %v1325 = vrot.slane %v1324, 2
    %v1326 = vadd.f32 %v1324, %v1325
    %v1327 = vrot.slane %v1326, 1
    %v1328 = vadd.f32 %v1326, %v1327
    %v1329 = vrot.slane %v1315, 4
    %v1330 = vadd.f32 %v1315, %v1329
    %v1331 = vrot.slane %v1330, 2
    %v1332 = vadd.f32 %v1330, %v1331
    %v1333 = vrot.slane %v1332, 1
    %v1334 = vadd.f32 %v1332, %v1333
    %v1335 = vrot.slane %v1316, 4
    %v1336 = vadd.f32 %v1316, %v1335
    %v1337 = vrot.slane %v1336, 2
    %v1338 = vadd.f32 %v1336, %v1337
    %v1339 = vrot.slane %v1338, 1
    %v1340 = vadd.f32 %v1338, %v1339
    %v1341 = vmul.f32 %v1294, 0.125
    %v1342 = vmul.f32 %v1300, 0.125
    %v1343 = vmul.f32 %v1306, 0.125
    %v1344 = vmul.f32 %v1312, 0.125
    %v1345 = vmul.f32 %v1322, 0.125
    %v1346 = vmul.f32 %v1328, 0.125
    %v1347 = vmul.f32 %v1334, 0.125
    %v1348 = vmul.f32 %v1340, 0.125
    %v1349 = vmul.f32 %v1341, %v1341
    %v1350 = vmul.f32 %v1342, %v1342
    %v1351 = vmul.f32 %v1343, %v1343
    %v1352 = vmul.f32 %v1344, %v1344
    %v1353 = vsub.f32 %v1345, %v1349
    %v1354 = vsub.f32 %v1346, %v1350
    %v1355 = vsub.f32 %v1347, %v1351
    %v1356 = vsub.f32 %v1348, %v1352
    %v1357 = vadd.f32 %v1353, 1e-05
    %v1358 = vadd.f32 %v1354, 1e-05
    %v1359 = vadd.f32 %v1355, 1e-05
    %v1360 = vadd.f32 %v1356, 1e-05
    %v1361 = vrsqrt.pop %v1357
    %v1362 = vrsqrt.pop %v1358
    %v1363 = vrsqrt.pop %v1359
    %v1364 = vrsqrt.pop %v1360
    %v1365 = vmul.f32 %v1042, %v1361
    %v1366 = vmul.f32 %v1043, %v1362
    %v1367 = vmul.f32 %v1044, %v1363
    %v1368 = vmul.f32 %v1045, %v1364
    %v1369 = vmul.f32 %v1341, %v1365
    %v1370 = vmul.f32 %v1342, %v1366
    %v1371 = vmul.f32 %v1343, %v1367
    %v1372 = vmul.f32 %v1344, %v1368
    %v1377 = vrot.slane %v1369, 7
    %v1378 = vrot.slane %v1370, 7
    %v1379 = vrot.slane %v1371, 7
    %v1380 = vrot.slane %v1372, 7
    %v1385 = vsub.f32 %v1042, %v1377
    %v1386 = vsub.f32 %v1043, %v1378
    %v1387 = vsub.f32 %v1044, %v1379
    %v1388 = vsub.f32 %v1045, %v1380
    %v1389 = vlaneseq
    %v1390 = vshrl.u32 %v1389, 7
    %v1391 = vsub.s32 0, %v1390
    %v1392 = vrot.slane %v1365, %v1391
    %v1393 = vlaneseq
    %v1394 = vshrl.u32 %v1393, 7
    %v1395 = vsub.s32 0, %v1394
    %v1396 = vrot.slane %v1366, %v1395
    %v1397 = vlaneseq
    %v1398 = vshrl.u32 %v1397, 7
    %v1399 = vsub.s32 0, %v1398
    %v1400 = vrot.slane %v1367, %v1399
    %v1401 = vlaneseq
    %v1402 = vshrl.u32 %v1401, 7
    %v1403 = vsub.s32 0, %v1402
    %v1404 = vrot.slane %v1368, %v1403
    %v1405 = vmul.f32 %v1242, %v1392
    %v1406 = vmul.f32 %v1244, %v1396
    %v1407 = vmul.f32 %v1283, %v1400
    %v1408 = vmul.f32 %v1285, %v1404
    %v1409 = vlaneseq
    %v1410 = vshrl.u32 %v1409, 7
    %v1411 = vsub.s32 1, %v1410
    %v1412 = vrot.slane %v1385, %v1411
    %v1413 = vlaneseq
    %v1414 = vshrl.u32 %v1413, 7
    %v1415 = vsub.s32 1, %v1414
    %v1416 = vrot.slane %v1386, %v1415
    %v1417 = vlaneseq
    %v1418 = vshrl.u32 %v1417, 7
    %v1419 = vsub.s32 1, %v1418
    %v1420 = vrot.slane %v1387, %v1419
    %v1421 = vlaneseq
    %v1422 = vshrl.u32 %v1421, 7
    %v1423 = vsub.s32 1, %v1422
    %v1424 = vrot.slane %v1388, %v1423
    %v1425 = vadd.f32 %v1405, %v1412
    %v1426 = vadd.f32 %v1406, %v1416
    %v1427 = vadd.f32 %v1407, %v1420
    %v1428 = vadd.f32 %v1408, %v1424
    %v1429 = vmax.f32 %v1425, 0.0
    %v1430 = vmax.f32 %v1426, 0.0
    %v1431 = vmax.f32 %v1427, 0.0
    %v1432 = vmax.f32 %v1428, 0.0
    %v1433 = vld [vmem:[#allocation11] sm:$0xf]
    %v1434 = vld [vmem:[#allocation11 + $0x4] sm:$0xf]
    %v1435 = vld [vmem:[#allocation11 + $0x8] sm:$0xf]
    %v1436 = vld [vmem:[#allocation11 + $0xc] sm:$0xf]
    %v1437 = vld [vmem:[#allocation11 + $0x10] sm:$0xf]
    %v1438 = vld [vmem:[#allocation11 + $0x14] sm:$0xf]
    %v1439 = vld [vmem:[#allocation11 + $0x18] sm:$0xf]
    %v1440 = vld [vmem:[#allocation11 + $0x1c] sm:$0xf]
    %v1441 = vld [vmem:[#allocation11 + $0x20] sm:$0xf]
    %v1442 = vld [vmem:[#allocation11 + $0x24] sm:$0xf]
    %v1443 = vld [vmem:[#allocation11 + $0x28] sm:$0xf]
    %v1444 = vld [vmem:[#allocation11 + $0x2c] sm:$0xf]
    %v1445 = vld [vmem:[#allocation11 + $0x30] sm:$0xf]
    %v1446 = vld [vmem:[#allocation11 + $0x34] sm:$0xf]
    %v1447 = vld [vmem:[#allocation11 + $0x38] sm:$0xf]
    %v1448 = vld [vmem:[#allocation11 + $0x3c] sm:$0xf]
    %v1449 = vld [vmem:[#allocation11 + $0x40] sm:$0xf]
    %v1450 = vld [vmem:[#allocation11 + $0x44] sm:$0xf]
    %v1451 = vld [vmem:[#allocation11 + $0x48] sm:$0xf]
    %v1452 = vld [vmem:[#allocation11 + $0x4c] sm:$0xf]
    %v1453 = vld [vmem:[#allocation11 + $0x50] sm:$0xf]
    %v1454 = vld [vmem:[#allocation11 + $0x54] sm:$0xf]
    %v1455 = vld [vmem:[#allocation11 + $0x58] sm:$0xf]
    %v1456 = vld [vmem:[#allocation11 + $0x5c] sm:$0xf]
    %v1457 = vld [vmem:[#allocation11 + $0x60] sm:$0xf]
    %v1458 = vld [vmem:[#allocation11 + $0x64] sm:$0xf]
    %v1459 = vld [vmem:[#allocation11 + $0x68] sm:$0xf]
    %v1460 = vld [vmem:[#allocation11 + $0x6c] sm:$0xf]
    %v1461 = vld [vmem:[#allocation11 + $0x70] sm:$0xf]
    %v1462 = vld [vmem:[#allocation11 + $0x74] sm:$0xf]
    %v1463 = vld [vmem:[#allocation11 + $0x78] sm:$0xf]
    %v1464 = vld [vmem:[#allocation11 + $0x7c] sm:$0xf]
    %v1465 = vld [vmem:[#allocation11 + $0x80] sm:$0xf]
    %v1466 = vld [vmem:[#allocation11 + $0x84] sm:$0xf]
    %v1467 = vld [vmem:[#allocation11 + $0x88] sm:$0xf]
    %v1468 = vld [vmem:[#allocation11 + $0x8c] sm:$0xf]
    %v1469 = vld [vmem:[#allocation11 + $0x90] sm:$0xf]
    %v1470 = vld [vmem:[#allocation11 + $0x94] sm:$0xf]
    %v1471 = vld [vmem:[#allocation11 + $0x98] sm:$0xf]
    %v1472 = vld [vmem:[#allocation11 + $0x9c] sm:$0xf]
    %v1473 = vld [vmem:[#allocation11 + $0xa0] sm:$0xf]
    %v1474 = vld [vmem:[#allocation11 + $0xa4] sm:$0xf]
    %v1475 = vld [vmem:[#allocation11 + $0xa8] sm:$0xf]
    %v1476 = vld [vmem:[#allocation11 + $0xac] sm:$0xf]
    %v1477 = vld [vmem:[#allocation11 + $0xb0] sm:$0xf]
    %v1478 = vld [vmem:[#allocation11 + $0xb4] sm:$0xf]
    %v1479 = vld [vmem:[#allocation11 + $0xb8] sm:$0xf]
    %v1480 = vld [vmem:[#allocation11 + $0xbc] sm:$0xf]
    %v1481 = vld [vmem:[#allocation11 + $0xc0] sm:$0xf]
    %v1482 = vld [vmem:[#allocation11 + $0xc4] sm:$0xf]
    %v1483 = vld [vmem:[#allocation11 + $0xc8] sm:$0xf]
    %v1484 = vld [vmem:[#allocation11 + $0xcc] sm:$0xf]
    %v1485 = vld [vmem:[#allocation11 + $0xd0] sm:$0xf]
    %v1486 = vld [vmem:[#allocation11 + $0xd4] sm:$0xf]
    %v1487 = vld [vmem:[#allocation11 + $0xd8] sm:$0xf]
    %v1488 = vld [vmem:[#allocation11 + $0xdc] sm:$0xf]
    %v1489 = vld [vmem:[#allocation11 + $0xe0] sm:$0xf]
    %v1490 = vld [vmem:[#allocation11 + $0xe4] sm:$0xf]
    %v1491 = vld [vmem:[#allocation11 + $0xe8] sm:$0xf]
    %v1492 = vld [vmem:[#allocation11 + $0xec] sm:$0xf]
    %v1493 = vld [vmem:[#allocation11 + $0xf0] sm:$0xf]
    %v1494 = vld [vmem:[#allocation11 + $0xf4] sm:$0xf]
    %v1495 = vld [vmem:[#allocation11 + $0xf8] sm:$0xf]
    %v1496 = vld [vmem:[#allocation11 + $0xfc] sm:$0xf]
    %v1497 = vld [vmem:[#allocation11 + $0x100] sm:$0x1]
    %v1498 = vunpack.c.l.bf16 %v1497
    %v1499 = vpack.c.bf16 %v1429, %v1429
    %v1500 = vpack.c.bf16 %v1430, %v1430
    %v1501 = vpack.c.bf16 %v1431, %v1431
    %v1502 = vpack.c.bf16 %v1432, %v1432
    %v1567 = vunpack.c.l.b16 %v1433
    %v1568 = vunpack.c.l.b16 %v1434
    %v1569 = vunpack.c.l.b16 %v1435
    %v1570 = vunpack.c.l.b16 %v1436
    %v1571 = vunpack.c.l.b16 %v1437
    %v1572 = vunpack.c.l.b16 %v1438
    %v1573 = vunpack.c.l.b16 %v1439
    %v1574 = vunpack.c.l.b16 %v1440
    %v1575 = vunpack.c.l.b16 %v1441
    %v1576 = vunpack.c.l.b16 %v1442
    %v1577 = vunpack.c.l.b16 %v1443
    %v1578 = vunpack.c.l.b16 %v1444
    %v1579 = vunpack.c.l.b16 %v1445
    %v1580 = vunpack.c.l.b16 %v1446
    %v1581 = vunpack.c.l.b16 %v1447
    %v1582 = vunpack.c.l.b16 %v1448
    %v1583 = vunpack.c.l.b16 %v1449
    %v1584 = vunpack.c.l.b16 %v1450
    %v1585 = vunpack.c.l.b16 %v1451
    %v1586 = vunpack.c.l.b16 %v1452
    %v1587 = vunpack.c.l.b16 %v1453
    %v1588 = vunpack.c.l.b16 %v1454
    %v1589 = vunpack.c.l.b16 %v1455
    %v1590 = vunpack.c.l.b16 %v1456
    %v1591 = vunpack.c.l.b16 %v1457
    %v1592 = vunpack.c.l.b16 %v1458
    %v1593 = vunpack.c.l.b16 %v1459
    %v1594 = vunpack.c.l.b16 %v1460
    %v1595 = vunpack.c.l.b16 %v1461
    %v1596 = vunpack.c.l.b16 %v1462
    %v1597 = vunpack.c.l.b16 %v1463
    %v1598 = vunpack.c.l.b16 %v1464
    %v1599 = vunpack.c.l.b16 %v1465
    %v1600 = vunpack.c.l.b16 %v1466
    %v1601 = vunpack.c.l.b16 %v1467
    %v1602 = vunpack.c.l.b16 %v1468
    %v1603 = vunpack.c.l.b16 %v1469
    %v1604 = vunpack.c.l.b16 %v1470
    %v1605 = vunpack.c.l.b16 %v1471
    %v1606 = vunpack.c.l.b16 %v1472
    %v1607 = vunpack.c.l.b16 %v1473
    %v1608 = vunpack.c.l.b16 %v1474
    %v1609 = vunpack.c.l.b16 %v1475
    %v1610 = vunpack.c.l.b16 %v1476
    %v1611 = vunpack.c.l.b16 %v1477
    %v1612 = vunpack.c.l.b16 %v1478
    %v1613 = vunpack.c.l.b16 %v1479
    %v1614 = vunpack.c.l.b16 %v1480
    %v1615 = vunpack.c.l.b16 %v1481
    %v1616 = vunpack.c.l.b16 %v1482
    %v1617 = vunpack.c.l.b16 %v1483
    %v1618 = vunpack.c.l.b16 %v1484
    %v1619 = vunpack.c.l.b16 %v1485
    %v1620 = vunpack.c.l.b16 %v1486
    %v1621 = vunpack.c.l.b16 %v1487
    %v1622 = vunpack.c.l.b16 %v1488
    %v1623 = vunpack.c.l.b16 %v1489
    %v1624 = vunpack.c.l.b16 %v1490
    %v1625 = vunpack.c.l.b16 %v1491
    %v1626 = vunpack.c.l.b16 %v1492
    %v1627 = vunpack.c.l.b16 %v1493
    %v1628 = vunpack.c.l.b16 %v1494
    %v1629 = vunpack.c.l.b16 %v1495
    %v1630 = vunpack.c.l.b16 %v1496
    %v1631 = vpack.c.b16 %v1568, %v1567
    %v1632 = vpack.c.b16 %v1570, %v1569
    %v1633 = vpack.c.b16 %v1572, %v1571
    %v1634 = vpack.c.b16 %v1574, %v1573
    %v1635 = vpack.c.b16 %v1576, %v1575
    %v1636 = vpack.c.b16 %v1578, %v1577
    %v1637 = vpack.c.b16 %v1580, %v1579
    %v1638 = vpack.c.b16 %v1582, %v1581
    %v1639 = vpack.c.b16 %v1584, %v1583
    %v1640 = vpack.c.b16 %v1586, %v1585
    %v1641 = vpack.c.b16 %v1588, %v1587
    %v1642 = vpack.c.b16 %v1590, %v1589
    %v1643 = vpack.c.b16 %v1592, %v1591
    %v1644 = vpack.c.b16 %v1594, %v1593
    %v1645 = vpack.c.b16 %v1596, %v1595
    %v1646 = vpack.c.b16 %v1598, %v1597
    %v1647 = vpack.c.b16 %v1600, %v1599
    %v1648 = vpack.c.b16 %v1602, %v1601
    %v1649 = vpack.c.b16 %v1604, %v1603
    %v1650 = vpack.c.b16 %v1606, %v1605
    %v1651 = vpack.c.b16 %v1608, %v1607
    %v1652 = vpack.c.b16 %v1610, %v1609
    %v1653 = vpack.c.b16 %v1612, %v1611
    %v1654 = vpack.c.b16 %v1614, %v1613
    %v1655 = vpack.c.b16 %v1616, %v1615
    %v1656 = vpack.c.b16 %v1618, %v1617
    %v1657 = vpack.c.b16 %v1620, %v1619
    %v1658 = vpack.c.b16 %v1622, %v1621
    %v1659 = vpack.c.b16 %v1624, %v1623
    %v1660 = vpack.c.b16 %v1626, %v1625
    %v1661 = vpack.c.b16 %v1628, %v1627
    %v1662 = vpack.c.b16 %v1630, %v1629
    %1695 = vmatprep.subr.bf16.mxu0 0
    %1696 = vmatpush1.bf16.msra.mxu0 %v1631
    %1697 = vmatprep.subr.bf16.mxu0 0
    %1698 = vmatpush1.bf16.msra.mxu0 %v1632
    %1699 = vmatprep.subr.bf16.mxu0 0
    %1700 = vmatpush1.bf16.msra.mxu0 %v1633
    %1701 = vmatprep.subr.bf16.mxu0 0
    %1702 = vmatpush1.bf16.msra.mxu0 %v1634
    %1703 = vmatprep.subr.bf16.mxu0 0
    %1704 = vmatpush1.bf16.msra.mxu0 %v1635
    %1705 = vmatprep.subr.bf16.mxu0 0
    %1706 = vmatpush1.bf16.msra.mxu0 %v1636
    %1707 = vmatprep.subr.bf16.mxu0 0
    %1708 = vmatpush1.bf16.msra.mxu0 %v1637
    %1709 = vmatprep.subr.bf16.mxu0 0
    %1710 = vmatpush1.bf16.msra.mxu0 %v1638
    %1711 = vmatprep.subr.bf16.mxu0 0
    %1712 = vmatpush1.bf16.msra.mxu0 %v1639
    %1713 = vmatprep.subr.bf16.mxu0 0
    %1714 = vmatpush1.bf16.msra.mxu0 %v1640
    %1715 = vmatprep.subr.bf16.mxu0 0
    %1716 = vmatpush1.bf16.msra.mxu0 %v1641
    %1717 = vmatprep.subr.bf16.mxu0 0
    %1718 = vmatpush1.bf16.msra.mxu0 %v1642
    %1719 = vmatprep.subr.bf16.mxu0 0
    %1720 = vmatpush1.bf16.msra.mxu0 %v1643
    %1721 = vmatprep.subr.bf16.mxu0 0
    %1722 = vmatpush1.bf16.msra.mxu0 %v1644
    %1723 = vmatprep.subr.bf16.mxu0 0
    %1724 = vmatpush1.bf16.msra.mxu0 %v1645
    %1725 = vmatprep.subr.bf16.mxu0 0
    %1726 = vmatpush1.bf16.msra.mxu0 %v1646
    %1727 = vmatprep.mubr.bf16.mxu0 %v1500
    %1728 = vmatmul.mubr.bf16.gmra.mrb[0].mxu0 %v1499
    %v1729 = vpop.f32.mrb[0].mxu0
    %v1730 = vadd.f32 0.0, %v1729
    %v1731 = vpop.f32.mrb[0].mxu0
    %v1732 = vpop.f32.mrb[0].mxu0
    %v1733 = vpop.f32.mrb[0].mxu0
    %1734 = vdwg.mxu0
    %1735 = vmatprep.subr.bf16.mxu0 0
    %1736 = vmatpush1.bf16.msra.mxu0 %v1647
    %1737 = vmatprep.subr.bf16.mxu0 0
    %1738 = vmatpush1.bf16.msra.mxu0 %v1648
    %1739 = vmatprep.subr.bf16.mxu0 0
    %1740 = vmatpush1.bf16.msra.mxu0 %v1649
    %1741 = vmatprep.subr.bf16.mxu0 0
    %1742 = vmatpush1.bf16.msra.mxu0 %v1650
    %1743 = vmatprep.subr.bf16.mxu0 0
    %1744 = vmatpush1.bf16.msra.mxu0 %v1651
    %1745 = vmatprep.subr.bf16.mxu0 0
    %1746 = vmatpush1.bf16.msra.mxu0 %v1652
    %1747 = vmatprep.subr.bf16.mxu0 0
    %1748 = vmatpush1.bf16.msra.mxu0 %v1653
    %1749 = vmatprep.subr.bf16.mxu0 0
    %1750 = vmatpush1.bf16.msra.mxu0 %v1654
    %1751 = vmatprep.subr.bf16.mxu0 0
    %1752 = vmatpush1.bf16.msra.mxu0 %v1655
    %1753 = vmatprep.subr.bf16.mxu0 0
    %1754 = vmatpush1.bf16.msra.mxu0 %v1656
    %1755 = vmatprep.subr.bf16.mxu0 0
    %1756 = vmatpush1.bf16.msra.mxu0 %v1657
    %1757 = vmatprep.subr.bf16.mxu0 0
    %1758 = vmatpush1.bf16.msra.mxu0 %v1658
    %1759 = vmatprep.subr.bf16.mxu0 0
    %1760 = vmatpush1.bf16.msra.mxu0 %v1659
    %1761 = vmatprep.subr.bf16.mxu0 0
    %1762 = vmatpush1.bf16.msra.mxu0 %v1660
    %1763 = vmatprep.subr.bf16.mxu0 0
    %1764 = vmatpush1.bf16.msra.mxu0 %v1661
    %1765 = vmatprep.subr.bf16.mxu0 0
    %1766 = vmatpush1.bf16.msra.mxu0 %v1662
    %1767 = vmatprep.mubr.bf16.mxu0 %v1502
    %1768 = vmatmul.mubr.bf16.gmra.mrb[0].mxu0 %v1501
    %v1769 = vpop.f32.mrb[0].mxu0
    %v1770 = vadd.f32 %v1730, %v1769
    %v1771 = vpop.f32.mrb[0].mxu0
    %v1772 = vpop.f32.mrb[0].mxu0
    %v1773 = vpop.f32.mrb[0].mxu0
    %1774 = vdwg.mxu0
    %v1775 = vrot.slane %v1770, 4
    %v1776 = vadd.f32 %v1770, %v1775
    %v1777 = vrot.slane %v1776, 2
    %v1778 = vadd.f32 %v1776, %v1777
    %v1779 = vrot.slane %v1778, 1
    %v1780 = vadd.f32 %v1778, %v1779
    %v1781 = vmul.f32 %v1770, %v1770
    %v1782 = vrot.slane %v1781, 4
    %v1783 = vadd.f32 %v1781, %v1782
    %v1784 = vrot.slane %v1783, 2
    %v1785 = vadd.f32 %v1783, %v1784
    %v1786 = vrot.slane %v1785, 1
    %v1787 = vadd.f32 %v1785, %v1786
    %v1788 = vmul.f32 %v1780, 0.125
    %v1789 = vmul.f32 %v1787, 0.125
    %v1790 = vmul.f32 %v1788, %v1788
    %v1791 = vsub.f32 %v1789, %v1790
    %v1792 = vadd.f32 %v1791, 1e-05
    %v1793 = vrsqrt.pop %v1792
    %v1794 = vmul.f32 %v1498, %v1793
    %v1795 = vmul.f32 %v1788, %v1794
    %v1797 = vrot.slane %v1795, 7
    %v1799 = vsub.f32 %v1498, %v1797
    %v1800 = vlaneseq
    %v1801 = vshrl.u32 %v1800, 7
    %v1802 = vsub.s32 0, %v1801
    %v1803 = vrot.slane %v1794, %v1802
    %v1804 = vmul.f32 %v1770, %v1803
    %v1805 = vlaneseq
    %v1806 = vshrl.u32 %v1805, 7
    %v1807 = vsub.s32 1, %v1806
    %v1808 = vrot.slane %v1799, %v1807
    %v1809 = vadd.f32 %v1804, %v1808
    %v1810 = vadd.f32 %v1007, %v1809
    %1811 = vst [vmem:[#allocation13] sm:$0xff] %v1810
    // Predicated region
    $region50: #{tpu_custom_call.1} parent=1 // pred_check
      _
    $region51: #{tpu_custom_call.1} parent=1 // pred_check_branch
      %1813 = sbr.rel (0) target = $region53
    $region52: #{tpu_custom_call.1} parent=1 // pred_region
      %s1815 = ssub.s32 128, 128
      %1816 = vsyncadd [#allocation4], %s1815
      %s1818 = sshll.u32 [#allocation13], 4
      %s1819 = int_to_ptr.vmem [resolvable:$true] %s1818
      %1821 = dma.vmem_to_hbm [thread:$0]  %s1819, 128, %s6, [#allocation4]
    $region53: #{tpu_custom_call.1} parent=1 // pred_fallthru
      _
    // Predicated region
    $region54: #{tpu_custom_call.1} parent=1 // pred_check
      _
    $region55: #{tpu_custom_call.1} parent=1 // pred_check_branch
      %1823 = sbr.rel (0) target = $region57
    $region56: #{tpu_custom_call.1} parent=1 // pred_region
      %1824 = dma.done [#allocation4], 128
    $region57: #{tpu_custom_call.1} parent=1 // pred_fallthru
      _
    %1825 = vsyncpa [#allocation3], 1
    %1826 = vsyncpa [#allocation6], 1
    %1827 = vsyncpa [#allocation9], 1
    %1828 = vsyncpa [#allocation12], 1
    %1829 = vsyncpa [#allocation4], 1

</llo_original>
